<compile_context>
chip_gen: v7x
topology: tpu7x:2x2x1
jax: 0.10.0
libtpu: 0.0.40
codegen_flags: <defaults>
</compile_context>

<pallas_src>
import math

import jax
import jax.numpy as jnp
from jax.experimental import pallas as pl
from jax.experimental.pallas import tpu as pltpu  # noqa: F401  (kept for TPU backend)

INPUT_DIM = 16
D_MODEL = 64
NHEAD = 4
NUM_LAYERS = 3
DIM_FF = 128
HEAD_DIM = D_MODEL // NHEAD
LN_EPS = 1e-5


def _mdot(a, b):
    """Single-pass MXU matmul: bf16 operands, f32 accumulation."""
    return jnp.dot(a.astype(jnp.bfloat16), b.astype(jnp.bfloat16),
                   preferred_element_type=jnp.float32)


def transformer_kernel(x_ref, w_in_ref, bias_in_ref,
                       wqkv_ref, bqkv_ref, wo_ref, bo_ref,
                       ln1w_ref, ln1b_ref, ln2w_ref, ln2b_ref,
                       w1_ref, b1_ref, w2_ref, b2_ref,
                       shd_ref, ehd_ref,
                       wfc1_ref, bfc1_ref, wfc2_ref, bfc2_ref,
                       out_ref):
    BT = x_ref.shape[0]           # B*T rows; row index = i*T + t
    T = BT // 2                   # B == 2 (length of the attended-over axis)
    D = w_in_ref.shape[1]
    L = wqkv_ref.shape[0]

    shd = shd_ref[...]            # (D, H) head-sum matrix, 1/sqrt(hd) pre-folded
    ehd = ehd_ref[...]            # (H, D) head-broadcast matrix

    def layernorm(h, w, b):
        mu = jnp.mean(h, axis=-1, keepdims=True)
        var = jnp.mean((h - mu) ** 2, axis=-1, keepdims=True)
        return (h - mu) * jax.lax.rsqrt(var + LN_EPS) * w + b

    # input_fc; (b_in + positional encoding) is pre-folded into bias_in.
    h = _mdot(x_ref[...], w_in_ref[...]) + bias_in_ref[...]        # (16, 64)

    for l in range(L):
        qkv = _mdot(h, wqkv_ref[l]) + bqkv_ref[l]                  # (16, 192)
        q = qkv[:, 0:D]
        k = qkv[:, D:2 * D]
        v = qkv[:, 2 * D:3 * D]

        # swap the two batch rows:  row i*T+t  ->  row (1-i)*T+t
        k_sw = jnp.concatenate([k[T:BT], k[0:T]], axis=0)          # (16, 64)
        v_sw = jnp.concatenate([v[T:BT], v[0:T]], axis=0)          # (16, 64)

        # all B*B per-head scores with ONE MXU dot:
        #   rows 0..15  -> pairs (i, j=i),  rows 16..31 -> pairs (i, j=1-i)
        qk = jnp.concatenate([q * k, q * k_sw], axis=0)            # (32, 64)
        scores = _mdot(qk, shd)                                    # (32, H)
        s_same = scores[0:BT]
        s_cross = scores[BT:2 * BT]

        # 2-way softmax over the (batch_first=False) sequence axis via the
        # sigmoid identity: p(j=i) = 1 / (1 + exp(s_cross - s_same)).
        p_same = pl.reciprocal(1.0 + jnp.exp(s_cross - s_same), approx=True)
        p_cross = 1.0 - p_same                                     # (16, H)

        # broadcast the per-head probabilities back to D lanes with one dot.
        pb = _mdot(jnp.concatenate([p_same, p_cross], axis=0), ehd)  # (32, D)
        attn = pb[0:BT] * v + pb[BT:2 * BT] * v_sw                 # (16, D)
        attn = _mdot(attn, wo_ref[l]) + bo_ref[l]

        # post-LN encoder layer (norm_first=False); dropout = identity (eval)
        h1 = layernorm(h + attn, ln1w_ref[l], ln1b_ref[l])
        ff = jnp.maximum(_mdot(h1, w1_ref[l]) + b1_ref[l], 0.0)
        ff = _mdot(ff, w2_ref[l]) + b2_ref[l]
        h = layernorm(h1 + ff, ln2w_ref[l], ln2b_ref[l])

    # mean over the torch dim-1 (T) axis for each batch row, then output MLP.
    pooled = jnp.concatenate(
        [jnp.mean(h[0:T], axis=0, keepdims=True),
         jnp.mean(h[T:BT], axis=0, keepdims=True)], axis=0)        # (2, 64)
    y = jnp.maximum(_mdot(pooled, wfc1_ref[...]) + bfc1_ref[...], 0.0)
    out_ref[...] = _mdot(y, wfc2_ref[...]) + bfc2_ref[...]         # single (2,2) store


def transformer_position_forward(x, params):
    B, T, _ = x.shape
    assert B == 2, "kernel specializes the length-2 attended (batch_first=False) axis"
    D, H = D_MODEL, NHEAD

    # Layout plumbing outside the kernel: flatten the batch rows into sublanes
    # and fold the input bias + positional encoding into one (B*T, D) constant.
    x2 = x.reshape(B * T, x.shape[-1])
    bias_in = jnp.tile(params["pe"][:T], (B, 1)) + params["b_in"]

    # block-diagonal head-sum / head-broadcast helpers (structural constants);
    # the 1/sqrt(head_dim) attention scale is pre-folded into the sum matrix.
    head_ids = jnp.arange(D) // HEAD_DIM
    shd = (head_ids[:, None] == jnp.arange(H)[None, :]).astype(jnp.float32)
    shd_scaled = shd / math.sqrt(HEAD_DIM)
    ehd = shd.T

    args = [x2, params["w_in"], bias_in,
            params["wqkv"], params["bqkv"], params["wo"], params["bo"],
            params["ln1w"], params["ln1b"], params["ln2w"], params["ln2b"],
            params["w1"], params["b1"], params["w2"], params["b2"],
            shd_scaled, ehd,
            params["wfc1"], params["bfc1"], params["wfc2"], params["bfc2"]]

    # No grid: a single fused invocation, everything resident in VMEM
    # (weights ~400 KB << VMEM on all generations).
    return pl.pallas_call(
        transformer_kernel,
        out_shape=jax.ShapeDtypeStruct((B, 2), jnp.float32),
    )(*args)


def init_params(key, input_dim=INPUT_DIM, d_model=D_MODEL, nhead=NHEAD,
                num_layers=NUM_LAYERS, dim_ff=DIM_FF, max_seq=8):
    keys = list(jax.random.split(key, 32))
    it = iter(keys)

    def w(shape):
        return jax.random.normal(next(it), shape, jnp.float32) * 0.1

    L = num_layers
    p = {}
    # all weight matrices are stored pre-transposed: y = x @ W + b
    p["w_in"] = w((input_dim, d_model))
    p["b_in"] = w((1, d_model))

    # sinusoidal positional encoding (first max_seq rows)
    position = jnp.arange(max_seq, dtype=jnp.float32)[:, None]
    div_term = jnp.exp(jnp.arange(0, d_model, 2, dtype=jnp.float32)
                       * (-math.log(10000.0) / d_model))
    pe = jnp.zeros((max_seq, d_model), jnp.float32)
    pe = pe.at[:, 0::2].set(jnp.sin(position * div_term))
    pe = pe.at[:, 1::2].set(jnp.cos(position * div_term))
    p["pe"] = pe

    p["wqkv"] = w((L, d_model, 3 * d_model))
    p["bqkv"] = w((L, 1, 3 * d_model))
    p["wo"] = w((L, d_model, d_model))
    p["bo"] = w((L, 1, d_model))
    p["ln1w"] = jnp.ones((L, 1, d_model), jnp.float32)
    p["ln1b"] = jnp.zeros((L, 1, d_model), jnp.float32)
    p["ln2w"] = jnp.ones((L, 1, d_model), jnp.float32)
    p["ln2b"] = jnp.zeros((L, 1, d_model), jnp.float32)
    p["w1"] = w((L, d_model, dim_ff))
    p["b1"] = w((L, 1, dim_ff))
    p["w2"] = w((L, dim_ff, d_model))
    p["b2"] = w((L, 1, d_model))

    p["wfc1"] = w((d_model, 64))
    p["bfc1"] = w((1, 64))
    p["wfc2"] = w((64, 2))
    p["bfc2"] = w((1, 2))
    return p


def reference_forward(x, params):
    """Pure-JAX mirror of the PyTorch forward (same params, same semantics)."""
    B, T, _ = x.shape
    D, H, hd = D_MODEL, NHEAD, HEAD_DIM

    def layernorm(z, w, b):
        mu = jnp.mean(z, axis=-1, keepdims=True)
        var = jnp.mean((z - mu) ** 2, axis=-1, keepdims=True)
        return (z - mu) * jax.lax.rsqrt(var + LN_EPS) * w + b

    h = x @ params["w_in"] + params["b_in"]
    h = h + params["pe"][None, :T, :]
    for l in range(NUM_LAYERS):
        qkv = h @ params["wqkv"][l] + params["bqkv"][l]
        q, k, v = qkv[..., :D], qkv[..., D:2 * D], qkv[..., 2 * D:]
        qh = q.reshape(B, T, H, hd)
        kh = k.reshape(B, T, H, hd)
        vh = v.reshape(B, T, H, hd)
        scores = jnp.einsum("ithd,jthd->thij", qh, kh) / math.sqrt(hd)
        p = jax.nn.softmax(scores, axis=-1)
        o = jnp.einsum("thij,jthd->ithd", p, vh).reshape(B, T, D)
        attn = o @ params["wo"][l] + params["bo"][l]
        h = layernorm(h + attn, params["ln1w"][l], params["ln1b"][l])
        ff = jax.nn.relu(h @ params["w1"][l] + params["b1"][l]) @ params["w2"][l] + params["b2"][l]
        h = layernorm(h + ff, params["ln2w"][l], params["ln2b"][l])
    pooled = h.mean(axis=1)
    return jax.nn.relu(pooled @ params["wfc1"] + params["bfc1"]) @ params["wfc2"] + params["bfc2"]


if __name__ == "__main__":
    B, T = 2, 8
    key = jax.random.PRNGKey(0)
    kx, kp = jax.random.split(key)
    x = jax.random.normal(kx, (B, T, INPUT_DIM), jnp.float32)
    params = init_params(kp, max_seq=T)

    out = transformer_position_forward(x, params)
    out = jax.block_until_ready(out)

    ref = reference_forward(x, params)
    err = float(jnp.max(jnp.abs(out - ref)))
    assert out.shape == (B, 2), out.shape
    assert err < 2e-2, f"mismatch vs reference: max abs err = {err}"
    print("KERNEL_OK")
</pallas_src>

<mosaic_0001>
module attributes {stable_mosaic.version = 11 : i64} {
  func.func @transformer_kernel(%arg0: memref<16x16xf32, #tpu.memory_space<vmem>>, %arg1: memref<16x64xf32, #tpu.memory_space<vmem>>, %arg2: memref<16x64xf32, #tpu.memory_space<vmem>>, %arg3: memref<3x64x192xf32, #tpu.memory_space<vmem>>, %arg4: memref<3x1x192xf32, #tpu.memory_space<vmem>>, %arg5: memref<3x64x64xf32, #tpu.memory_space<vmem>>, %arg6: memref<3x1x64xf32, #tpu.memory_space<vmem>>, %arg7: memref<3x1x64xf32, #tpu.memory_space<vmem>>, %arg8: memref<3x1x64xf32, #tpu.memory_space<vmem>>, %arg9: memref<3x1x64xf32, #tpu.memory_space<vmem>>, %arg10: memref<3x1x64xf32, #tpu.memory_space<vmem>>, %arg11: memref<3x64x128xf32, #tpu.memory_space<vmem>>, %arg12: memref<3x1x128xf32, #tpu.memory_space<vmem>>, %arg13: memref<3x128x64xf32, #tpu.memory_space<vmem>>, %arg14: memref<3x1x64xf32, #tpu.memory_space<vmem>>, %arg15: memref<64x4xf32, #tpu.memory_space<vmem>>, %arg16: memref<4x64xf32, #tpu.memory_space<vmem>>, %arg17: memref<64x64xf32, #tpu.memory_space<vmem>>, %arg18: memref<1x64xf32, #tpu.memory_space<vmem>>, %arg19: memref<64x2xf32, #tpu.memory_space<vmem>>, %arg20: memref<1x2xf32, #tpu.memory_space<vmem>>, %arg21: memref<2x2xf32, #tpu.memory_space<vmem>>) attributes {dimension_semantics = [], scalar_prefetch = 0 : i64, scratch_operands = 0 : i64, tpu.core_type = #tpu.core_type<tc>} {
    %c0 = arith.constant 0 : index
    %c0_0 = arith.constant 0 : index
    %0 = vector.load %arg15[%c0, %c0_0] : memref<64x4xf32, #tpu.memory_space<vmem>>, vector<64x4xf32>
    %c0_1 = arith.constant 0 : index
    %c0_2 = arith.constant 0 : index
    %1 = vector.load %arg16[%c0_1, %c0_2] : memref<4x64xf32, #tpu.memory_space<vmem>>, vector<4x64xf32>
    %c0_3 = arith.constant 0 : index
    %c0_4 = arith.constant 0 : index
    %2 = vector.load %arg0[%c0_3, %c0_4] : memref<16x16xf32, #tpu.memory_space<vmem>>, vector<16x16xf32>
    %c0_5 = arith.constant 0 : index
    %c0_6 = arith.constant 0 : index
    %3 = vector.load %arg1[%c0_5, %c0_6] : memref<16x64xf32, #tpu.memory_space<vmem>>, vector<16x64xf32>
    %4 = arith.truncf %2 : vector<16x16xf32> to vector<16x16xbf16>
    %5 = arith.truncf %3 : vector<16x64xf32> to vector<16x64xbf16>
    %cst = arith.constant dense<0.000000e+00> : vector<16x64xf32>
    %6 = tpu.matmul %4, %5, %cst {dimension_numbers = #tpu.dot_dimension_numbers<[1], [0], [0], [1], [0, 0, 1, 1], [], []>} : vector<16x16xbf16>, vector<16x64xbf16>, vector<16x64xf32> -> vector<16x64xf32>
    %c0_7 = arith.constant 0 : index
    %c0_8 = arith.constant 0 : index
    %7 = vector.load %arg2[%c0_7, %c0_8] : memref<16x64xf32, #tpu.memory_space<vmem>>, vector<16x64xf32>
    %8 = arith.addf %6, %7 : vector<16x64xf32>
    %c0_9 = arith.constant 0 : index
    %c0_10 = arith.constant 0 : index
    %c0_11 = arith.constant 0 : index
    %9 = vector.load %arg3[%c0_9, %c0_10, %c0_11] : memref<3x64x192xf32, #tpu.memory_space<vmem>>, vector<1x64x192xf32>
    %10 = vector.shape_cast %9 : vector<1x64x192xf32> to vector<64x192xf32>
    %11 = arith.truncf %8 : vector<16x64xf32> to vector<16x64xbf16>
    %12 = arith.truncf %10 : vector<64x192xf32> to vector<64x192xbf16>
    %cst_12 = arith.constant dense<0.000000e+00> : vector<16x192xf32>
    %13 = tpu.matmul %11, %12, %cst_12 {dimension_numbers = #tpu.dot_dimension_numbers<[1], [0], [0], [1], [0, 0, 1, 1], [], []>} : vector<16x64xbf16>, vector<64x192xbf16>, vector<16x192xf32> -> vector<16x192xf32>
    %c0_13 = arith.constant 0 : index
    %c0_14 = arith.constant 0 : index
    %c0_15 = arith.constant 0 : index
    %14 = vector.load %arg4[%c0_13, %c0_14, %c0_15] : memref<3x1x192xf32, #tpu.memory_space<vmem>>, vector<1x1x192xf32>
    %15 = vector.shape_cast %14 : vector<1x1x192xf32> to vector<1x192xf32>
    %16 = vector.broadcast %15 : vector<1x192xf32> to vector<16x192xf32>
    %17 = arith.addf %13, %16 : vector<16x192xf32>
    %18 = vector.extract_strided_slice %17 {offsets = [0, 0], sizes = [16, 64], strides = [1, 1]} : vector<16x192xf32> to vector<16x64xf32>
    %19 = vector.extract_strided_slice %17 {offsets = [0, 64], sizes = [16, 64], strides = [1, 1]} : vector<16x192xf32> to vector<16x64xf32>
    %20 = vector.extract_strided_slice %17 {offsets = [0, 128], sizes = [16, 64], strides = [1, 1]} : vector<16x192xf32> to vector<16x64xf32>
    %21 = vector.extract_strided_slice %19 {offsets = [8, 0], sizes = [8, 64], strides = [1, 1]} : vector<16x64xf32> to vector<8x64xf32>
    %22 = vector.extract_strided_slice %19 {offsets = [0, 0], sizes = [8, 64], strides = [1, 1]} : vector<16x64xf32> to vector<8x64xf32>
    %23 = tpu.concatenate %21, %22 in 0 : vector<8x64xf32>, vector<8x64xf32> -> vector<16x64xf32>
    %24 = vector.extract_strided_slice %20 {offsets = [8, 0], sizes = [8, 64], strides = [1, 1]} : vector<16x64xf32> to vector<8x64xf32>
    %25 = vector.extract_strided_slice %20 {offsets = [0, 0], sizes = [8, 64], strides = [1, 1]} : vector<16x64xf32> to vector<8x64xf32>
    %26 = tpu.concatenate %24, %25 in 0 : vector<8x64xf32>, vector<8x64xf32> -> vector<16x64xf32>
    %27 = arith.mulf %18, %19 : vector<16x64xf32>
    %28 = arith.mulf %18, %23 : vector<16x64xf32>
    %29 = tpu.concatenate %27, %28 in 0 : vector<16x64xf32>, vector<16x64xf32> -> vector<32x64xf32>
    %30 = arith.truncf %29 : vector<32x64xf32> to vector<32x64xbf16>
    %31 = arith.truncf %0 : vector<64x4xf32> to vector<64x4xbf16>
    %cst_16 = arith.constant dense<0.000000e+00> : vector<32x4xf32>
    %32 = tpu.matmul %30, %31, %cst_16 {dimension_numbers = #tpu.dot_dimension_numbers<[1], [0], [0], [1], [0, 0, 1, 1], [], []>} : vector<32x64xbf16>, vector<64x4xbf16>, vector<32x4xf32> -> vector<32x4xf32>
    %33 = vector.extract_strided_slice %32 {offsets = [0, 0], sizes = [16, 4], strides = [1, 1]} : vector<32x4xf32> to vector<16x4xf32>
    %34 = vector.extract_strided_slice %32 {offsets = [16, 0], sizes = [16, 4], strides = [1, 1]} : vector<32x4xf32> to vector<16x4xf32>
    %35 = arith.subf %34, %33 : vector<16x4xf32>
    %36 = math.exp %35 : vector<16x4xf32>
    %cst_17 = arith.constant 1.000000e+00 : f32
    %37 = vector.broadcast %cst_17 : f32 to vector<16x4xf32>
    %38 = arith.addf %37, %36 : vector<16x4xf32>
    %39 = tpu.reciprocal %38 {approx = true} : vector<16x4xf32> -> vector<16x4xf32>
    %cst_18 = arith.constant 1.000000e+00 : f32
    %40 = vector.broadcast %cst_18 : f32 to vector<16x4xf32>
    %41 = arith.subf %40, %39 : vector<16x4xf32>
    %42 = tpu.concatenate %39, %41 in 0 : vector<16x4xf32>, vector<16x4xf32> -> vector<32x4xf32>
    %43 = arith.truncf %42 : vector<32x4xf32> to vector<32x4xbf16>
    %44 = arith.truncf %1 : vector<4x64xf32> to vector<4x64xbf16>
    %cst_19 = arith.constant dense<0.000000e+00> : vector<32x64xf32>
    %45 = tpu.matmul %43, %44, %cst_19 {dimension_numbers = #tpu.dot_dimension_numbers<[1], [0], [0], [1], [0, 0, 1, 1], [], []>} : vector<32x4xbf16>, vector<4x64xbf16>, vector<32x64xf32> -> vector<32x64xf32>
    %46 = vector.extract_strided_slice %45 {offsets = [0, 0], sizes = [16, 64], strides = [1, 1]} : vector<32x64xf32> to vector<16x64xf32>
    %47 = arith.mulf %46, %20 : vector<16x64xf32>
    %48 = vector.extract_strided_slice %45 {offsets = [16, 0], sizes = [16, 64], strides = [1, 1]} : vector<32x64xf32> to vector<16x64xf32>
    %49 = arith.mulf %48, %26 : vector<16x64xf32>
    %50 = arith.addf %47, %49 : vector<16x64xf32>
    %c0_20 = arith.constant 0 : index
    %c0_21 = arith.constant 0 : index
    %c0_22 = arith.constant 0 : index
    %51 = vector.load %arg5[%c0_20, %c0_21, %c0_22] : memref<3x64x64xf32, #tpu.memory_space<vmem>>, vector<1x64x64xf32>
    %52 = vector.shape_cast %51 : vector<1x64x64xf32> to vector<64x64xf32>
    %53 = arith.truncf %50 : vector<16x64xf32> to vector<16x64xbf16>
    %54 = arith.truncf %52 : vector<64x64xf32> to vector<64x64xbf16>
    %cst_23 = arith.constant dense<0.000000e+00> : vector<16x64xf32>
    %55 = tpu.matmul %53, %54, %cst_23 {dimension_numbers = #tpu.dot_dimension_numbers<[1], [0], [0], [1], [0, 0, 1, 1], [], []>} : vector<16x64xbf16>, vector<64x64xbf16>, vector<16x64xf32> -> vector<16x64xf32>
    %c0_24 = arith.constant 0 : index
    %c0_25 = arith.constant 0 : index
    %c0_26 = arith.constant 0 : index
    %56 = vector.load %arg6[%c0_24, %c0_25, %c0_26] : memref<3x1x64xf32, #tpu.memory_space<vmem>>, vector<1x1x64xf32>
    %57 = vector.shape_cast %56 : vector<1x1x64xf32> to vector<1x64xf32>
    %58 = vector.broadcast %57 : vector<1x64xf32> to vector<16x64xf32>
    %59 = arith.addf %55, %58 : vector<16x64xf32>
    %60 = arith.addf %8, %59 : vector<16x64xf32>
    %c0_27 = arith.constant 0 : index
    %c0_28 = arith.constant 0 : index
    %c0_29 = arith.constant 0 : index
    %61 = vector.load %arg7[%c0_27, %c0_28, %c0_29] : memref<3x1x64xf32, #tpu.memory_space<vmem>>, vector<1x1x64xf32>
    %62 = vector.shape_cast %61 : vector<1x1x64xf32> to vector<1x64xf32>
    %c0_30 = arith.constant 0 : index
    %c0_31 = arith.constant 0 : index
    %c0_32 = arith.constant 0 : index
    %63 = vector.load %arg8[%c0_30, %c0_31, %c0_32] : memref<3x1x64xf32, #tpu.memory_space<vmem>>, vector<1x1x64xf32>
    %64 = vector.shape_cast %63 : vector<1x1x64xf32> to vector<1x64xf32>
    %cst_33 = arith.constant dense<0.000000e+00> : vector<16xf32>
    %65 = vector.multi_reduction <add>, %60, %cst_33 [1] : vector<16x64xf32> to vector<16xf32>
    %66 = vector.shape_cast %65 : vector<16xf32> to vector<16x1xf32>
    %cst_34 = arith.constant 6.400000e+01 : f32
    %67 = vector.broadcast %cst_34 : f32 to vector<16x1xf32>
    %68 = arith.divf %66, %67 : vector<16x1xf32>
    %69 = vector.broadcast %68 : vector<16x1xf32> to vector<16x64xf32>
    %70 = arith.subf %60, %69 : vector<16x64xf32>
    %71 = arith.mulf %70, %70 : vector<16x64xf32>
    %cst_35 = arith.constant dense<0.000000e+00> : vector<16xf32>
    %72 = vector.multi_reduction <add>, %71, %cst_35 [1] : vector<16x64xf32> to vector<16xf32>
    %73 = vector.shape_cast %72 : vector<16xf32> to vector<16x1xf32>
    %cst_36 = arith.constant 6.400000e+01 : f32
    %74 = vector.broadcast %cst_36 : f32 to vector<16x1xf32>
    %75 = arith.divf %73, %74 : vector<16x1xf32>
    %76 = vector.broadcast %68 : vector<16x1xf32> to vector<16x64xf32>
    %77 = arith.subf %60, %76 : vector<16x64xf32>
    %cst_37 = arith.constant 9.99999974E-6 : f32
    %78 = vector.broadcast %cst_37 : f32 to vector<16x1xf32>
    %79 = arith.addf %75, %78 : vector<16x1xf32>
    %80 = math.rsqrt %79 : vector<16x1xf32>
    %81 = vector.broadcast %80 : vector<16x1xf32> to vector<16x64xf32>
    %82 = arith.mulf %77, %81 : vector<16x64xf32>
    %83 = vector.broadcast %62 : vector<1x64xf32> to vector<16x64xf32>
    %84 = arith.mulf %82, %83 : vector<16x64xf32>
    %85 = vector.broadcast %64 : vector<1x64xf32> to vector<16x64xf32>
    %86 = arith.addf %84, %85 : vector<16x64xf32>
    %c0_38 = arith.constant 0 : index
    %c0_39 = arith.constant 0 : index
    %c0_40 = arith.constant 0 : index
    %87 = vector.load %arg11[%c0_38, %c0_39, %c0_40] : memref<3x64x128xf32, #tpu.memory_space<vmem>>, vector<1x64x128xf32>
    %88 = vector.shape_cast %87 : vector<1x64x128xf32> to vector<64x128xf32>
    %89 = arith.truncf %86 : vector<16x64xf32> to vector<16x64xbf16>
    %90 = arith.truncf %88 : vector<64x128xf32> to vector<64x128xbf16>
    %cst_41 = arith.constant dense<0.000000e+00> : vector<16x128xf32>
    %91 = tpu.matmul %89, %90, %cst_41 {dimension_numbers = #tpu.dot_dimension_numbers<[1], [0], [0], [1], [0, 0, 1, 1], [], []>} : vector<16x64xbf16>, vector<64x128xbf16>, vector<16x128xf32> -> vector<16x128xf32>
    %c0_42 = arith.constant 0 : index
    %c0_43 = arith.constant 0 : index
    %c0_44 = arith.constant 0 : index
    %92 = vector.load %arg12[%c0_42, %c0_43, %c0_44] : memref<3x1x128xf32, #tpu.memory_space<vmem>>, vector<1x1x128xf32>
    %93 = vector.shape_cast %92 : vector<1x1x128xf32> to vector<1x128xf32>
    %94 = vector.broadcast %93 : vector<1x128xf32> to vector<16x128xf32>
    %95 = arith.addf %91, %94 : vector<16x128xf32>
    %cst_45 = arith.constant 0.000000e+00 : f32
    %96 = vector.broadcast %cst_45 : f32 to vector<16x128xf32>
    %97 = arith.maximumf %95, %96 : vector<16x128xf32>
    %c0_46 = arith.constant 0 : index
    %c0_47 = arith.constant 0 : index
    %c0_48 = arith.constant 0 : index
    %98 = vector.load %arg13[%c0_46, %c0_47, %c0_48] : memref<3x128x64xf32, #tpu.memory_space<vmem>>, vector<1x128x64xf32>
    %99 = vector.shape_cast %98 : vector<1x128x64xf32> to vector<128x64xf32>
    %100 = arith.truncf %97 : vector<16x128xf32> to vector<16x128xbf16>
    %101 = arith.truncf %99 : vector<128x64xf32> to vector<128x64xbf16>
    %cst_49 = arith.constant dense<0.000000e+00> : vector<16x64xf32>
    %102 = tpu.matmul %100, %101, %cst_49 {dimension_numbers = #tpu.dot_dimension_numbers<[1], [0], [0], [1], [0, 0, 1, 1], [], []>} : vector<16x128xbf16>, vector<128x64xbf16>, vector<16x64xf32> -> vector<16x64xf32>
    %c0_50 = arith.constant 0 : index
    %c0_51 = arith.constant 0 : index
    %c0_52 = arith.constant 0 : index
    %103 = vector.load %arg14[%c0_50, %c0_51, %c0_52] : memref<3x1x64xf32, #tpu.memory_space<vmem>>, vector<1x1x64xf32>
    %104 = vector.shape_cast %103 : vector<1x1x64xf32> to vector<1x64xf32>
    %105 = vector.broadcast %104 : vector<1x64xf32> to vector<16x64xf32>
    %106 = arith.addf %102, %105 : vector<16x64xf32>
    %107 = arith.addf %86, %106 : vector<16x64xf32>
    %c0_53 = arith.constant 0 : index
    %c0_54 = arith.constant 0 : index
    %c0_55 = arith.constant 0 : index
    %108 = vector.load %arg9[%c0_53, %c0_54, %c0_55] : memref<3x1x64xf32, #tpu.memory_space<vmem>>, vector<1x1x64xf32>
    %109 = vector.shape_cast %108 : vector<1x1x64xf32> to vector<1x64xf32>
    %c0_56 = arith.constant 0 : index
    %c0_57 = arith.constant 0 : index
    %c0_58 = arith.constant 0 : index
    %110 = vector.load %arg10[%c0_56, %c0_57, %c0_58] : memref<3x1x64xf32, #tpu.memory_space<vmem>>, vector<1x1x64xf32>
    %111 = vector.shape_cast %110 : vector<1x1x64xf32> to vector<1x64xf32>
    %cst_59 = arith.constant dense<0.000000e+00> : vector<16xf32>
    %112 = vector.multi_reduction <add>, %107, %cst_59 [1] : vector<16x64xf32> to vector<16xf32>
    %113 = vector.shape_cast %112 : vector<16xf32> to vector<16x1xf32>
    %cst_60 = arith.constant 6.400000e+01 : f32
    %114 = vector.broadcast %cst_60 : f32 to vector<16x1xf32>
    %115 = arith.divf %113, %114 : vector<16x1xf32>
    %116 = vector.broadcast %115 : vector<16x1xf32> to vector<16x64xf32>
    %117 = arith.subf %107, %116 : vector<16x64xf32>
    %118 = arith.mulf %117, %117 : vector<16x64xf32>
    %cst_61 = arith.constant dense<0.000000e+00> : vector<16xf32>
    %119 = vector.multi_reduction <add>, %118, %cst_61 [1] : vector<16x64xf32> to vector<16xf32>
    %120 = vector.shape_cast %119 : vector<16xf32> to vector<16x1xf32>
    %cst_62 = arith.constant 6.400000e+01 : f32
    %121 = vector.broadcast %cst_62 : f32 to vector<16x1xf32>
    %122 = arith.divf %120, %121 : vector<16x1xf32>
    %123 = vector.broadcast %115 : vector<16x1xf32> to vector<16x64xf32>
    %124 = arith.subf %107, %123 : vector<16x64xf32>
    %cst_63 = arith.constant 9.99999974E-6 : f32
    %125 = vector.broadcast %cst_63 : f32 to vector<16x1xf32>
    %126 = arith.addf %122, %125 : vector<16x1xf32>
    %127 = math.rsqrt %126 : vector<16x1xf32>
    %128 = vector.broadcast %127 : vector<16x1xf32> to vector<16x64xf32>
    %129 = arith.mulf %124, %128 : vector<16x64xf32>
    %130 = vector.broadcast %109 : vector<1x64xf32> to vector<16x64xf32>
    %131 = arith.mulf %129, %130 : vector<16x64xf32>
    %132 = vector.broadcast %111 : vector<1x64xf32> to vector<16x64xf32>
    %133 = arith.addf %131, %132 : vector<16x64xf32>
    %c1 = arith.constant 1 : index
    %c0_64 = arith.constant 0 : index
    %c0_65 = arith.constant 0 : index
    %134 = vector.load %arg3[%c1, %c0_64, %c0_65] : memref<3x64x192xf32, #tpu.memory_space<vmem>>, vector<1x64x192xf32>
    %135 = vector.shape_cast %134 : vector<1x64x192xf32> to vector<64x192xf32>
    %136 = arith.truncf %133 : vector<16x64xf32> to vector<16x64xbf16>
    %137 = arith.truncf %135 : vector<64x192xf32> to vector<64x192xbf16>
    %cst_66 = arith.constant dense<0.000000e+00> : vector<16x192xf32>
    %138 = tpu.matmul %136, %137, %cst_66 {dimension_numbers = #tpu.dot_dimension_numbers<[1], [0], [0], [1], [0, 0, 1, 1], [], []>} : vector<16x64xbf16>, vector<64x192xbf16>, vector<16x192xf32> -> vector<16x192xf32>
    %c1_67 = arith.constant 1 : index
    %c0_68 = arith.constant 0 : index
    %c0_69 = arith.constant 0 : index
    %139 = vector.load %arg4[%c1_67, %c0_68, %c0_69] : memref<3x1x192xf32, #tpu.memory_space<vmem>>, vector<1x1x192xf32>
    %140 = vector.shape_cast %139 : vector<1x1x192xf32> to vector<1x192xf32>
    %141 = vector.broadcast %140 : vector<1x192xf32> to vector<16x192xf32>
    %142 = arith.addf %138, %141 : vector<16x192xf32>
    %143 = vector.extract_strided_slice %142 {offsets = [0, 0], sizes = [16, 64], strides = [1, 1]} : vector<16x192xf32> to vector<16x64xf32>
    %144 = vector.extract_strided_slice %142 {offsets = [0, 64], sizes = [16, 64], strides = [1, 1]} : vector<16x192xf32> to vector<16x64xf32>
    %145 = vector.extract_strided_slice %142 {offsets = [0, 128], sizes = [16, 64], strides = [1, 1]} : vector<16x192xf32> to vector<16x64xf32>
    %146 = vector.extract_strided_slice %144 {offsets = [8, 0], sizes = [8, 64], strides = [1, 1]} : vector<16x64xf32> to vector<8x64xf32>
    %147 = vector.extract_strided_slice %144 {offsets = [0, 0], sizes = [8, 64], strides = [1, 1]} : vector<16x64xf32> to vector<8x64xf32>
    %148 = tpu.concatenate %146, %147 in 0 : vector<8x64xf32>, vector<8x64xf32> -> vector<16x64xf32>
    %149 = vector.extract_strided_slice %145 {offsets = [8, 0], sizes = [8, 64], strides = [1, 1]} : vector<16x64xf32> to vector<8x64xf32>
    %150 = vector.extract_strided_slice %145 {offsets = [0, 0], sizes = [8, 64], strides = [1, 1]} : vector<16x64xf32> to vector<8x64xf32>
    %151 = tpu.concatenate %149, %150 in 0 : vector<8x64xf32>, vector<8x64xf32> -> vector<16x64xf32>
    %152 = arith.mulf %143, %144 : vector<16x64xf32>
    %153 = arith.mulf %143, %148 : vector<16x64xf32>
    %154 = tpu.concatenate %152, %153 in 0 : vector<16x64xf32>, vector<16x64xf32> -> vector<32x64xf32>
    %155 = arith.truncf %154 : vector<32x64xf32> to vector<32x64xbf16>
    %156 = arith.truncf %0 : vector<64x4xf32> to vector<64x4xbf16>
    %cst_70 = arith.constant dense<0.000000e+00> : vector<32x4xf32>
    %157 = tpu.matmul %155, %156, %cst_70 {dimension_numbers = #tpu.dot_dimension_numbers<[1], [0], [0], [1], [0, 0, 1, 1], [], []>} : vector<32x64xbf16>, vector<64x4xbf16>, vector<32x4xf32> -> vector<32x4xf32>
    %158 = vector.extract_strided_slice %157 {offsets = [0, 0], sizes = [16, 4], strides = [1, 1]} : vector<32x4xf32> to vector<16x4xf32>
    %159 = vector.extract_strided_slice %157 {offsets = [16, 0], sizes = [16, 4], strides = [1, 1]} : vector<32x4xf32> to vector<16x4xf32>
    %160 = arith.subf %159, %158 : vector<16x4xf32>
    %161 = math.exp %160 : vector<16x4xf32>
    %cst_71 = arith.constant 1.000000e+00 : f32
    %162 = vector.broadcast %cst_71 : f32 to vector<16x4xf32>
    %163 = arith.addf %162, %161 : vector<16x4xf32>
    %164 = tpu.reciprocal %163 {approx = true} : vector<16x4xf32> -> vector<16x4xf32>
    %cst_72 = arith.constant 1.000000e+00 : f32
    %165 = vector.broadcast %cst_72 : f32 to vector<16x4xf32>
    %166 = arith.subf %165, %164 : vector<16x4xf32>
    %167 = tpu.concatenate %164, %166 in 0 : vector<16x4xf32>, vector<16x4xf32> -> vector<32x4xf32>
    %168 = arith.truncf %167 : vector<32x4xf32> to vector<32x4xbf16>
    %169 = arith.truncf %1 : vector<4x64xf32> to vector<4x64xbf16>
    %cst_73 = arith.constant dense<0.000000e+00> : vector<32x64xf32>
    %170 = tpu.matmul %168, %169, %cst_73 {dimension_numbers = #tpu.dot_dimension_numbers<[1], [0], [0], [1], [0, 0, 1, 1], [], []>} : vector<32x4xbf16>, vector<4x64xbf16>, vector<32x64xf32> -> vector<32x64xf32>
    %171 = vector.extract_strided_slice %170 {offsets = [0, 0], sizes = [16, 64], strides = [1, 1]} : vector<32x64xf32> to vector<16x64xf32>
    %172 = arith.mulf %171, %145 : vector<16x64xf32>
    %173 = vector.extract_strided_slice %170 {offsets = [16, 0], sizes = [16, 64], strides = [1, 1]} : vector<32x64xf32> to vector<16x64xf32>
    %174 = arith.mulf %173, %151 : vector<16x64xf32>
    %175 = arith.addf %172, %174 : vector<16x64xf32>
    %c1_74 = arith.constant 1 : index
    %c0_75 = arith.constant 0 : index
    %c0_76 = arith.constant 0 : index
    %176 = vector.load %arg5[%c1_74, %c0_75, %c0_76] : memref<3x64x64xf32, #tpu.memory_space<vmem>>, vector<1x64x64xf32>
    %177 = vector.shape_cast %176 : vector<1x64x64xf32> to vector<64x64xf32>
    %178 = arith.truncf %175 : vector<16x64xf32> to vector<16x64xbf16>
    %179 = arith.truncf %177 : vector<64x64xf32> to vector<64x64xbf16>
    %cst_77 = arith.constant dense<0.000000e+00> : vector<16x64xf32>
    %180 = tpu.matmul %178, %179, %cst_77 {dimension_numbers = #tpu.dot_dimension_numbers<[1], [0], [0], [1], [0, 0, 1, 1], [], []>} : vector<16x64xbf16>, vector<64x64xbf16>, vector<16x64xf32> -> vector<16x64xf32>
    %c1_78 = arith.constant 1 : index
    %c0_79 = arith.constant 0 : index
    %c0_80 = arith.constant 0 : index
    %181 = vector.load %arg6[%c1_78, %c0_79, %c0_80] : memref<3x1x64xf32, #tpu.memory_space<vmem>>, vector<1x1x64xf32>
    %182 = vector.shape_cast %181 : vector<1x1x64xf32> to vector<1x64xf32>
    %183 = vector.broadcast %182 : vector<1x64xf32> to vector<16x64xf32>
    %184 = arith.addf %180, %183 : vector<16x64xf32>
    %185 = arith.addf %133, %184 : vector<16x64xf32>
    %c1_81 = arith.constant 1 : index
    %c0_82 = arith.constant 0 : index
    %c0_83 = arith.constant 0 : index
    %186 = vector.load %arg7[%c1_81, %c0_82, %c0_83] : memref<3x1x64xf32, #tpu.memory_space<vmem>>, vector<1x1x64xf32>
    %187 = vector.shape_cast %186 : vector<1x1x64xf32> to vector<1x64xf32>
    %c1_84 = arith.constant 1 : index
    %c0_85 = arith.constant 0 : index
    %c0_86 = arith.constant 0 : index
    %188 = vector.load %arg8[%c1_84, %c0_85, %c0_86] : memref<3x1x64xf32, #tpu.memory_space<vmem>>, vector<1x1x64xf32>
    %189 = vector.shape_cast %188 : vector<1x1x64xf32> to vector<1x64xf32>
    %cst_87 = arith.constant dense<0.000000e+00> : vector<16xf32>
    %190 = vector.multi_reduction <add>, %185, %cst_87 [1] : vector<16x64xf32> to vector<16xf32>
    %191 = vector.shape_cast %190 : vector<16xf32> to vector<16x1xf32>
    %cst_88 = arith.constant 6.400000e+01 : f32
    %192 = vector.broadcast %cst_88 : f32 to vector<16x1xf32>
    %193 = arith.divf %191, %192 : vector<16x1xf32>
    %194 = vector.broadcast %193 : vector<16x1xf32> to vector<16x64xf32>
    %195 = arith.subf %185, %194 : vector<16x64xf32>
    %196 = arith.mulf %195, %195 : vector<16x64xf32>
    %cst_89 = arith.constant dense<0.000000e+00> : vector<16xf32>
    %197 = vector.multi_reduction <add>, %196, %cst_89 [1] : vector<16x64xf32> to vector<16xf32>
    %198 = vector.shape_cast %197 : vector<16xf32> to vector<16x1xf32>
    %cst_90 = arith.constant 6.400000e+01 : f32
    %199 = vector.broadcast %cst_90 : f32 to vector<16x1xf32>
    %200 = arith.divf %198, %199 : vector<16x1xf32>
    %201 = vector.broadcast %193 : vector<16x1xf32> to vector<16x64xf32>
    %202 = arith.subf %185, %201 : vector<16x64xf32>
    %cst_91 = arith.constant 9.99999974E-6 : f32
    %203 = vector.broadcast %cst_91 : f32 to vector<16x1xf32>
    %204 = arith.addf %200, %203 : vector<16x1xf32>
    %205 = math.rsqrt %204 : vector<16x1xf32>
    %206 = vector.broadcast %205 : vector<16x1xf32> to vector<16x64xf32>
    %207 = arith.mulf %202, %206 : vector<16x64xf32>
    %208 = vector.broadcast %187 : vector<1x64xf32> to vector<16x64xf32>
    %209 = arith.mulf %207, %208 : vector<16x64xf32>
    %210 = vector.broadcast %189 : vector<1x64xf32> to vector<16x64xf32>
    %211 = arith.addf %209, %210 : vector<16x64xf32>
    %c1_92 = arith.constant 1 : index
    %c0_93 = arith.constant 0 : index
    %c0_94 = arith.constant 0 : index
    %212 = vector.load %arg11[%c1_92, %c0_93, %c0_94] : memref<3x64x128xf32, #tpu.memory_space<vmem>>, vector<1x64x128xf32>
    %213 = vector.shape_cast %212 : vector<1x64x128xf32> to vector<64x128xf32>
    %214 = arith.truncf %211 : vector<16x64xf32> to vector<16x64xbf16>
    %215 = arith.truncf %213 : vector<64x128xf32> to vector<64x128xbf16>
    %cst_95 = arith.constant dense<0.000000e+00> : vector<16x128xf32>
    %216 = tpu.matmul %214, %215, %cst_95 {dimension_numbers = #tpu.dot_dimension_numbers<[1], [0], [0], [1], [0, 0, 1, 1], [], []>} : vector<16x64xbf16>, vector<64x128xbf16>, vector<16x128xf32> -> vector<16x128xf32>
    %c1_96 = arith.constant 1 : index
    %c0_97 = arith.constant 0 : index
    %c0_98 = arith.constant 0 : index
    %217 = vector.load %arg12[%c1_96, %c0_97, %c0_98] : memref<3x1x128xf32, #tpu.memory_space<vmem>>, vector<1x1x128xf32>
    %218 = vector.shape_cast %217 : vector<1x1x128xf32> to vector<1x128xf32>
    %219 = vector.broadcast %218 : vector<1x128xf32> to vector<16x128xf32>
    %220 = arith.addf %216, %219 : vector<16x128xf32>
    %cst_99 = arith.constant 0.000000e+00 : f32
    %221 = vector.broadcast %cst_99 : f32 to vector<16x128xf32>
    %222 = arith.maximumf %220, %221 : vector<16x128xf32>
    %c1_100 = arith.constant 1 : index
    %c0_101 = arith.constant 0 : index
    %c0_102 = arith.constant 0 : index
    %223 = vector.load %arg13[%c1_100, %c0_101, %c0_102] : memref<3x128x64xf32, #tpu.memory_space<vmem>>, vector<1x128x64xf32>
    %224 = vector.shape_cast %223 : vector<1x128x64xf32> to vector<128x64xf32>
    %225 = arith.truncf %222 : vector<16x128xf32> to vector<16x128xbf16>
    %226 = arith.truncf %224 : vector<128x64xf32> to vector<128x64xbf16>
    %cst_103 = arith.constant dense<0.000000e+00> : vector<16x64xf32>
    %227 = tpu.matmul %225, %226, %cst_103 {dimension_numbers = #tpu.dot_dimension_numbers<[1], [0], [0], [1], [0, 0, 1, 1], [], []>} : vector<16x128xbf16>, vector<128x64xbf16>, vector<16x64xf32> -> vector<16x64xf32>
    %c1_104 = arith.constant 1 : index
    %c0_105 = arith.constant 0 : index
    %c0_106 = arith.constant 0 : index
    %228 = vector.load %arg14[%c1_104, %c0_105, %c0_106] : memref<3x1x64xf32, #tpu.memory_space<vmem>>, vector<1x1x64xf32>
    %229 = vector.shape_cast %228 : vector<1x1x64xf32> to vector<1x64xf32>
    %230 = vector.broadcast %229 : vector<1x64xf32> to vector<16x64xf32>
    %231 = arith.addf %227, %230 : vector<16x64xf32>
    %232 = arith.addf %211, %231 : vector<16x64xf32>
    %c1_107 = arith.constant 1 : index
    %c0_108 = arith.constant 0 : index
    %c0_109 = arith.constant 0 : index
    %233 = vector.load %arg9[%c1_107, %c0_108, %c0_109] : memref<3x1x64xf32, #tpu.memory_space<vmem>>, vector<1x1x64xf32>
    %234 = vector.shape_cast %233 : vector<1x1x64xf32> to vector<1x64xf32>
    %c1_110 = arith.constant 1 : index
    %c0_111 = arith.constant 0 : index
    %c0_112 = arith.constant 0 : index
    %235 = vector.load %arg10[%c1_110, %c0_111, %c0_112] : memref<3x1x64xf32, #tpu.memory_space<vmem>>, vector<1x1x64xf32>
    %236 = vector.shape_cast %235 : vector<1x1x64xf32> to vector<1x64xf32>
    %cst_113 = arith.constant dense<0.000000e+00> : vector<16xf32>
    %237 = vector.multi_reduction <add>, %232, %cst_113 [1] : vector<16x64xf32> to vector<16xf32>
    %238 = vector.shape_cast %237 : vector<16xf32> to vector<16x1xf32>
    %cst_114 = arith.constant 6.400000e+01 : f32
    %239 = vector.broadcast %cst_114 : f32 to vector<16x1xf32>
    %240 = arith.divf %238, %239 : vector<16x1xf32>
    %241 = vector.broadcast %240 : vector<16x1xf32> to vector<16x64xf32>
    %242 = arith.subf %232, %241 : vector<16x64xf32>
    %243 = arith.mulf %242, %242 : vector<16x64xf32>
    %cst_115 = arith.constant dense<0.000000e+00> : vector<16xf32>
    %244 = vector.multi_reduction <add>, %243, %cst_115 [1] : vector<16x64xf32> to vector<16xf32>
    %245 = vector.shape_cast %244 : vector<16xf32> to vector<16x1xf32>
    %cst_116 = arith.constant 6.400000e+01 : f32
    %246 = vector.broadcast %cst_116 : f32 to vector<16x1xf32>
    %247 = arith.divf %245, %246 : vector<16x1xf32>
    %248 = vector.broadcast %240 : vector<16x1xf32> to vector<16x64xf32>
    %249 = arith.subf %232, %248 : vector<16x64xf32>
    %cst_117 = arith.constant 9.99999974E-6 : f32
    %250 = vector.broadcast %cst_117 : f32 to vector<16x1xf32>
    %251 = arith.addf %247, %250 : vector<16x1xf32>
    %252 = math.rsqrt %251 : vector<16x1xf32>
    %253 = vector.broadcast %252 : vector<16x1xf32> to vector<16x64xf32>
    %254 = arith.mulf %249, %253 : vector<16x64xf32>
    %255 = vector.broadcast %234 : vector<1x64xf32> to vector<16x64xf32>
    %256 = arith.mulf %254, %255 : vector<16x64xf32>
    %257 = vector.broadcast %236 : vector<1x64xf32> to vector<16x64xf32>
    %258 = arith.addf %256, %257 : vector<16x64xf32>
    %c2 = arith.constant 2 : index
    %c0_118 = arith.constant 0 : index
    %c0_119 = arith.constant 0 : index
    %259 = vector.load %arg3[%c2, %c0_118, %c0_119] : memref<3x64x192xf32, #tpu.memory_space<vmem>>, vector<1x64x192xf32>
    %260 = vector.shape_cast %259 : vector<1x64x192xf32> to vector<64x192xf32>
    %261 = arith.truncf %258 : vector<16x64xf32> to vector<16x64xbf16>
    %262 = arith.truncf %260 : vector<64x192xf32> to vector<64x192xbf16>
    %cst_120 = arith.constant dense<0.000000e+00> : vector<16x192xf32>
    %263 = tpu.matmul %261, %262, %cst_120 {dimension_numbers = #tpu.dot_dimension_numbers<[1], [0], [0], [1], [0, 0, 1, 1], [], []>} : vector<16x64xbf16>, vector<64x192xbf16>, vector<16x192xf32> -> vector<16x192xf32>
    %c2_121 = arith.constant 2 : index
    %c0_122 = arith.constant 0 : index
    %c0_123 = arith.constant 0 : index
    %264 = vector.load %arg4[%c2_121, %c0_122, %c0_123] : memref<3x1x192xf32, #tpu.memory_space<vmem>>, vector<1x1x192xf32>
    %265 = vector.shape_cast %264 : vector<1x1x192xf32> to vector<1x192xf32>
    %266 = vector.broadcast %265 : vector<1x192xf32> to vector<16x192xf32>
    %267 = arith.addf %263, %266 : vector<16x192xf32>
    %268 = vector.extract_strided_slice %267 {offsets = [0, 0], sizes = [16, 64], strides = [1, 1]} : vector<16x192xf32> to vector<16x64xf32>
    %269 = vector.extract_strided_slice %267 {offsets = [0, 64], sizes = [16, 64], strides = [1, 1]} : vector<16x192xf32> to vector<16x64xf32>
    %270 = vector.extract_strided_slice %267 {offsets = [0, 128], sizes = [16, 64], strides = [1, 1]} : vector<16x192xf32> to vector<16x64xf32>
    %271 = vector.extract_strided_slice %269 {offsets = [8, 0], sizes = [8, 64], strides = [1, 1]} : vector<16x64xf32> to vector<8x64xf32>
    %272 = vector.extract_strided_slice %269 {offsets = [0, 0], sizes = [8, 64], strides = [1, 1]} : vector<16x64xf32> to vector<8x64xf32>
    %273 = tpu.concatenate %271, %272 in 0 : vector<8x64xf32>, vector<8x64xf32> -> vector<16x64xf32>
    %274 = vector.extract_strided_slice %270 {offsets = [8, 0], sizes = [8, 64], strides = [1, 1]} : vector<16x64xf32> to vector<8x64xf32>
    %275 = vector.extract_strided_slice %270 {offsets = [0, 0], sizes = [8, 64], strides = [1, 1]} : vector<16x64xf32> to vector<8x64xf32>
    %276 = tpu.concatenate %274, %275 in 0 : vector<8x64xf32>, vector<8x64xf32> -> vector<16x64xf32>
    %277 = arith.mulf %268, %269 : vector<16x64xf32>
    %278 = arith.mulf %268, %273 : vector<16x64xf32>
    %279 = tpu.concatenate %277, %278 in 0 : vector<16x64xf32>, vector<16x64xf32> -> vector<32x64xf32>
    %280 = arith.truncf %279 : vector<32x64xf32> to vector<32x64xbf16>
    %281 = arith.truncf %0 : vector<64x4xf32> to vector<64x4xbf16>
    %cst_124 = arith.constant dense<0.000000e+00> : vector<32x4xf32>
    %282 = tpu.matmul %280, %281, %cst_124 {dimension_numbers = #tpu.dot_dimension_numbers<[1], [0], [0], [1], [0, 0, 1, 1], [], []>} : vector<32x64xbf16>, vector<64x4xbf16>, vector<32x4xf32> -> vector<32x4xf32>
    %283 = vector.extract_strided_slice %282 {offsets = [0, 0], sizes = [16, 4], strides = [1, 1]} : vector<32x4xf32> to vector<16x4xf32>
    %284 = vector.extract_strided_slice %282 {offsets = [16, 0], sizes = [16, 4], strides = [1, 1]} : vector<32x4xf32> to vector<16x4xf32>
    %285 = arith.subf %284, %283 : vector<16x4xf32>
    %286 = math.exp %285 : vector<16x4xf32>
    %cst_125 = arith.constant 1.000000e+00 : f32
    %287 = vector.broadcast %cst_125 : f32 to vector<16x4xf32>
    %288 = arith.addf %287, %286 : vector<16x4xf32>
    %289 = tpu.reciprocal %288 {approx = true} : vector<16x4xf32> -> vector<16x4xf32>
    %cst_126 = arith.constant 1.000000e+00 : f32
    %290 = vector.broadcast %cst_126 : f32 to vector<16x4xf32>
    %291 = arith.subf %290, %289 : vector<16x4xf32>
    %292 = tpu.concatenate %289, %291 in 0 : vector<16x4xf32>, vector<16x4xf32> -> vector<32x4xf32>
    %293 = arith.truncf %292 : vector<32x4xf32> to vector<32x4xbf16>
    %294 = arith.truncf %1 : vector<4x64xf32> to vector<4x64xbf16>
    %cst_127 = arith.constant dense<0.000000e+00> : vector<32x64xf32>
    %295 = tpu.matmul %293, %294, %cst_127 {dimension_numbers = #tpu.dot_dimension_numbers<[1], [0], [0], [1], [0, 0, 1, 1], [], []>} : vector<32x4xbf16>, vector<4x64xbf16>, vector<32x64xf32> -> vector<32x64xf32>
    %296 = vector.extract_strided_slice %295 {offsets = [0, 0], sizes = [16, 64], strides = [1, 1]} : vector<32x64xf32> to vector<16x64xf32>
    %297 = arith.mulf %296, %270 : vector<16x64xf32>
    %298 = vector.extract_strided_slice %295 {offsets = [16, 0], sizes = [16, 64], strides = [1, 1]} : vector<32x64xf32> to vector<16x64xf32>
    %299 = arith.mulf %298, %276 : vector<16x64xf32>
    %300 = arith.addf %297, %299 : vector<16x64xf32>
    %c2_128 = arith.constant 2 : index
    %c0_129 = arith.constant 0 : index
    %c0_130 = arith.constant 0 : index
    %301 = vector.load %arg5[%c2_128, %c0_129, %c0_130] : memref<3x64x64xf32, #tpu.memory_space<vmem>>, vector<1x64x64xf32>
    %302 = vector.shape_cast %301 : vector<1x64x64xf32> to vector<64x64xf32>
    %303 = arith.truncf %300 : vector<16x64xf32> to vector<16x64xbf16>
    %304 = arith.truncf %302 : vector<64x64xf32> to vector<64x64xbf16>
    %cst_131 = arith.constant dense<0.000000e+00> : vector<16x64xf32>
    %305 = tpu.matmul %303, %304, %cst_131 {dimension_numbers = #tpu.dot_dimension_numbers<[1], [0], [0], [1], [0, 0, 1, 1], [], []>} : vector<16x64xbf16>, vector<64x64xbf16>, vector<16x64xf32> -> vector<16x64xf32>
    %c2_132 = arith.constant 2 : index
    %c0_133 = arith.constant 0 : index
    %c0_134 = arith.constant 0 : index
    %306 = vector.load %arg6[%c2_132, %c0_133, %c0_134] : memref<3x1x64xf32, #tpu.memory_space<vmem>>, vector<1x1x64xf32>
    %307 = vector.shape_cast %306 : vector<1x1x64xf32> to vector<1x64xf32>
    %308 = vector.broadcast %307 : vector<1x64xf32> to vector<16x64xf32>
    %309 = arith.addf %305, %308 : vector<16x64xf32>
    %310 = arith.addf %258, %309 : vector<16x64xf32>
    %c2_135 = arith.constant 2 : index
    %c0_136 = arith.constant 0 : index
    %c0_137 = arith.constant 0 : index
    %311 = vector.load %arg7[%c2_135, %c0_136, %c0_137] : memref<3x1x64xf32, #tpu.memory_space<vmem>>, vector<1x1x64xf32>
    %312 = vector.shape_cast %311 : vector<1x1x64xf32> to vector<1x64xf32>
    %c2_138 = arith.constant 2 : index
    %c0_139 = arith.constant 0 : index
    %c0_140 = arith.constant 0 : index
    %313 = vector.load %arg8[%c2_138, %c0_139, %c0_140] : memref<3x1x64xf32, #tpu.memory_space<vmem>>, vector<1x1x64xf32>
    %314 = vector.shape_cast %313 : vector<1x1x64xf32> to vector<1x64xf32>
    %cst_141 = arith.constant dense<0.000000e+00> : vector<16xf32>
    %315 = vector.multi_reduction <add>, %310, %cst_141 [1] : vector<16x64xf32> to vector<16xf32>
    %316 = vector.shape_cast %315 : vector<16xf32> to vector<16x1xf32>
    %cst_142 = arith.constant 6.400000e+01 : f32
    %317 = vector.broadcast %cst_142 : f32 to vector<16x1xf32>
    %318 = arith.divf %316, %317 : vector<16x1xf32>
    %319 = vector.broadcast %318 : vector<16x1xf32> to vector<16x64xf32>
    %320 = arith.subf %310, %319 : vector<16x64xf32>
    %321 = arith.mulf %320, %320 : vector<16x64xf32>
    %cst_143 = arith.constant dense<0.000000e+00> : vector<16xf32>
    %322 = vector.multi_reduction <add>, %321, %cst_143 [1] : vector<16x64xf32> to vector<16xf32>
    %323 = vector.shape_cast %322 : vector<16xf32> to vector<16x1xf32>
    %cst_144 = arith.constant 6.400000e+01 : f32
    %324 = vector.broadcast %cst_144 : f32 to vector<16x1xf32>
    %325 = arith.divf %323, %324 : vector<16x1xf32>
    %326 = vector.broadcast %318 : vector<16x1xf32> to vector<16x64xf32>
    %327 = arith.subf %310, %326 : vector<16x64xf32>
    %cst_145 = arith.constant 9.99999974E-6 : f32
    %328 = vector.broadcast %cst_145 : f32 to vector<16x1xf32>
    %329 = arith.addf %325, %328 : vector<16x1xf32>
    %330 = math.rsqrt %329 : vector<16x1xf32>
    %331 = vector.broadcast %330 : vector<16x1xf32> to vector<16x64xf32>
    %332 = arith.mulf %327, %331 : vector<16x64xf32>
    %333 = vector.broadcast %312 : vector<1x64xf32> to vector<16x64xf32>
    %334 = arith.mulf %332, %333 : vector<16x64xf32>
    %335 = vector.broadcast %314 : vector<1x64xf32> to vector<16x64xf32>
    %336 = arith.addf %334, %335 : vector<16x64xf32>
    %c2_146 = arith.constant 2 : index
    %c0_147 = arith.constant 0 : index
    %c0_148 = arith.constant 0 : index
    %337 = vector.load %arg11[%c2_146, %c0_147, %c0_148] : memref<3x64x128xf32, #tpu.memory_space<vmem>>, vector<1x64x128xf32>
    %338 = vector.shape_cast %337 : vector<1x64x128xf32> to vector<64x128xf32>
    %339 = arith.truncf %336 : vector<16x64xf32> to vector<16x64xbf16>
    %340 = arith.truncf %338 : vector<64x128xf32> to vector<64x128xbf16>
    %cst_149 = arith.constant dense<0.000000e+00> : vector<16x128xf32>
    %341 = tpu.matmul %339, %340, %cst_149 {dimension_numbers = #tpu.dot_dimension_numbers<[1], [0], [0], [1], [0, 0, 1, 1], [], []>} : vector<16x64xbf16>, vector<64x128xbf16>, vector<16x128xf32> -> vector<16x128xf32>
    %c2_150 = arith.constant 2 : index
    %c0_151 = arith.constant 0 : index
    %c0_152 = arith.constant 0 : index
    %342 = vector.load %arg12[%c2_150, %c0_151, %c0_152] : memref<3x1x128xf32, #tpu.memory_space<vmem>>, vector<1x1x128xf32>
    %343 = vector.shape_cast %342 : vector<1x1x128xf32> to vector<1x128xf32>
    %344 = vector.broadcast %343 : vector<1x128xf32> to vector<16x128xf32>
    %345 = arith.addf %341, %344 : vector<16x128xf32>
    %cst_153 = arith.constant 0.000000e+00 : f32
    %346 = vector.broadcast %cst_153 : f32 to vector<16x128xf32>
    %347 = arith.maximumf %345, %346 : vector<16x128xf32>
    %c2_154 = arith.constant 2 : index
    %c0_155 = arith.constant 0 : index
    %c0_156 = arith.constant 0 : index
    %348 = vector.load %arg13[%c2_154, %c0_155, %c0_156] : memref<3x128x64xf32, #tpu.memory_space<vmem>>, vector<1x128x64xf32>
    %349 = vector.shape_cast %348 : vector<1x128x64xf32> to vector<128x64xf32>
    %350 = arith.truncf %347 : vector<16x128xf32> to vector<16x128xbf16>
    %351 = arith.truncf %349 : vector<128x64xf32> to vector<128x64xbf16>
    %cst_157 = arith.constant dense<0.000000e+00> : vector<16x64xf32>
    %352 = tpu.matmul %350, %351, %cst_157 {dimension_numbers = #tpu.dot_dimension_numbers<[1], [0], [0], [1], [0, 0, 1, 1], [], []>} : vector<16x128xbf16>, vector<128x64xbf16>, vector<16x64xf32> -> vector<16x64xf32>
    %c2_158 = arith.constant 2 : index
    %c0_159 = arith.constant 0 : index
    %c0_160 = arith.constant 0 : index
    %353 = vector.load %arg14[%c2_158, %c0_159, %c0_160] : memref<3x1x64xf32, #tpu.memory_space<vmem>>, vector<1x1x64xf32>
    %354 = vector.shape_cast %353 : vector<1x1x64xf32> to vector<1x64xf32>
    %355 = vector.broadcast %354 : vector<1x64xf32> to vector<16x64xf32>
    %356 = arith.addf %352, %355 : vector<16x64xf32>
    %357 = arith.addf %336, %356 : vector<16x64xf32>
    %c2_161 = arith.constant 2 : index
    %c0_162 = arith.constant 0 : index
    %c0_163 = arith.constant 0 : index
    %358 = vector.load %arg9[%c2_161, %c0_162, %c0_163] : memref<3x1x64xf32, #tpu.memory_space<vmem>>, vector<1x1x64xf32>
    %359 = vector.shape_cast %358 : vector<1x1x64xf32> to vector<1x64xf32>
    %c2_164 = arith.constant 2 : index
    %c0_165 = arith.constant 0 : index
    %c0_166 = arith.constant 0 : index
    %360 = vector.load %arg10[%c2_164, %c0_165, %c0_166] : memref<3x1x64xf32, #tpu.memory_space<vmem>>, vector<1x1x64xf32>
    %361 = vector.shape_cast %360 : vector<1x1x64xf32> to vector<1x64xf32>
    %cst_167 = arith.constant dense<0.000000e+00> : vector<16xf32>
    %362 = vector.multi_reduction <add>, %357, %cst_167 [1] : vector<16x64xf32> to vector<16xf32>
    %363 = vector.shape_cast %362 : vector<16xf32> to vector<16x1xf32>
    %cst_168 = arith.constant 6.400000e+01 : f32
    %364 = vector.broadcast %cst_168 : f32 to vector<16x1xf32>
    %365 = arith.divf %363, %364 : vector<16x1xf32>
    %366 = vector.broadcast %365 : vector<16x1xf32> to vector<16x64xf32>
    %367 = arith.subf %357, %366 : vector<16x64xf32>
    %368 = arith.mulf %367, %367 : vector<16x64xf32>
    %cst_169 = arith.constant dense<0.000000e+00> : vector<16xf32>
    %369 = vector.multi_reduction <add>, %368, %cst_169 [1] : vector<16x64xf32> to vector<16xf32>
    %370 = vector.shape_cast %369 : vector<16xf32> to vector<16x1xf32>
    %cst_170 = arith.constant 6.400000e+01 : f32
    %371 = vector.broadcast %cst_170 : f32 to vector<16x1xf32>
    %372 = arith.divf %370, %371 : vector<16x1xf32>
    %373 = vector.broadcast %365 : vector<16x1xf32> to vector<16x64xf32>
    %374 = arith.subf %357, %373 : vector<16x64xf32>
    %cst_171 = arith.constant 9.99999974E-6 : f32
    %375 = vector.broadcast %cst_171 : f32 to vector<16x1xf32>
    %376 = arith.addf %372, %375 : vector<16x1xf32>
    %377 = math.rsqrt %376 : vector<16x1xf32>
    %378 = vector.broadcast %377 : vector<16x1xf32> to vector<16x64xf32>
    %379 = arith.mulf %374, %378 : vector<16x64xf32>
    %380 = vector.broadcast %359 : vector<1x64xf32> to vector<16x64xf32>
    %381 = arith.mulf %379, %380 : vector<16x64xf32>
    %382 = vector.broadcast %361 : vector<1x64xf32> to vector<16x64xf32>
    %383 = arith.addf %381, %382 : vector<16x64xf32>
    %384 = vector.extract_strided_slice %383 {offsets = [0, 0], sizes = [8, 64], strides = [1, 1]} : vector<16x64xf32> to vector<8x64xf32>
    %cst_172 = arith.constant dense<0.000000e+00> : vector<64xf32>
    %385 = vector.multi_reduction <add>, %384, %cst_172 [0] : vector<8x64xf32> to vector<64xf32>
    %386 = vector.shape_cast %385 : vector<64xf32> to vector<1x64xf32>
    %cst_173 = arith.constant 8.000000e+00 : f32
    %387 = vector.broadcast %cst_173 : f32 to vector<1x64xf32>
    %388 = arith.divf %386, %387 : vector<1x64xf32>
    %389 = vector.extract_strided_slice %383 {offsets = [8, 0], sizes = [8, 64], strides = [1, 1]} : vector<16x64xf32> to vector<8x64xf32>
    %cst_174 = arith.constant dense<0.000000e+00> : vector<64xf32>
    %390 = vector.multi_reduction <add>, %389, %cst_174 [0] : vector<8x64xf32> to vector<64xf32>
    %391 = vector.shape_cast %390 : vector<64xf32> to vector<1x64xf32>
    %cst_175 = arith.constant 8.000000e+00 : f32
    %392 = vector.broadcast %cst_175 : f32 to vector<1x64xf32>
    %393 = arith.divf %391, %392 : vector<1x64xf32>
    %394 = tpu.concatenate %388, %393 in 0 : vector<1x64xf32>, vector<1x64xf32> -> vector<2x64xf32>
    %c0_176 = arith.constant 0 : index
    %c0_177 = arith.constant 0 : index
    %395 = vector.load %arg17[%c0_176, %c0_177] : memref<64x64xf32, #tpu.memory_space<vmem>>, vector<64x64xf32>
    %396 = arith.truncf %394 : vector<2x64xf32> to vector<2x64xbf16>
    %397 = arith.truncf %395 : vector<64x64xf32> to vector<64x64xbf16>
    %cst_178 = arith.constant dense<0.000000e+00> : vector<2x64xf32>
    %398 = tpu.matmul %396, %397, %cst_178 {dimension_numbers = #tpu.dot_dimension_numbers<[1], [0], [0], [1], [0, 0, 1, 1], [], []>} : vector<2x64xbf16>, vector<64x64xbf16>, vector<2x64xf32> -> vector<2x64xf32>
    %c0_179 = arith.constant 0 : index
    %c0_180 = arith.constant 0 : index
    %399 = vector.load %arg18[%c0_179, %c0_180] : memref<1x64xf32, #tpu.memory_space<vmem>>, vector<1x64xf32>
    %400 = vector.broadcast %399 : vector<1x64xf32> to vector<2x64xf32>
    %401 = arith.addf %398, %400 : vector<2x64xf32>
    %cst_181 = arith.constant 0.000000e+00 : f32
    %402 = vector.broadcast %cst_181 : f32 to vector<2x64xf32>
    %403 = arith.maximumf %401, %402 : vector<2x64xf32>
    %c0_182 = arith.constant 0 : index
    %c0_183 = arith.constant 0 : index
    %404 = vector.load %arg19[%c0_182, %c0_183] : memref<64x2xf32, #tpu.memory_space<vmem>>, vector<64x2xf32>
    %405 = arith.truncf %403 : vector<2x64xf32> to vector<2x64xbf16>
    %406 = arith.truncf %404 : vector<64x2xf32> to vector<64x2xbf16>
    %cst_184 = arith.constant dense<0.000000e+00> : vector<2x2xf32>
    %407 = tpu.matmul %405, %406, %cst_184 {dimension_numbers = #tpu.dot_dimension_numbers<[1], [0], [0], [1], [0, 0, 1, 1], [], []>} : vector<2x64xbf16>, vector<64x2xbf16>, vector<2x2xf32> -> vector<2x2xf32>
    %c0_185 = arith.constant 0 : index
    %c0_186 = arith.constant 0 : index
    %408 = vector.load %arg20[%c0_185, %c0_186] : memref<1x2xf32, #tpu.memory_space<vmem>>, vector<1x2xf32>
    %409 = vector.broadcast %408 : vector<1x2xf32> to vector<2x2xf32>
    %410 = arith.addf %407, %409 : vector<2x2xf32>
    %c0_187 = arith.constant 0 : index
    %c0_188 = arith.constant 0 : index
    %411 = vector.load %arg21[%c0_187, %c0_188] : memref<2x2xf32, #tpu.memory_space<vmem>>, vector<2x2xf32>
    tpu.vector_store %arg21[%c0_187, %c0_188], %410 {strides = array<i32>} : memref<2x2xf32, #tpu.memory_space<vmem>>, vector<2x2xf32>,
    return
  }
}

</mosaic_0001>

<llo_original>
// kernel: tpu_custom_call.1
$region0: #{tpu_custom_call.1}
  #allocation0 [shape = 'u32[]', space=smem, size = 0x4, offset = 0x4, fixed_abs, tag = 'smem constant byte address 0x4 - core index']
  #allocation1 [shape = 'u32[144,128]{1,0:T(1,128)}', space=vmem, size = 0x12000, scoped, tag = 'internal scratch']
  %s0 = inlined_call_operand.vmem [shape: f32[16,16], index: 0, kind: input, shape index: {}]
  %s1 = inlined_call_operand.vmem [shape: f32[16,64], index: 1, kind: input, shape index: {}]
  %s2 = inlined_call_operand.vmem [shape: f32[16,64], index: 2, kind: input, shape index: {}]
  %s3 = inlined_call_operand.vmem [shape: f32[3,64,192], index: 3, kind: input, shape index: {}]
  %s4 = inlined_call_operand.vmem [shape: f32[3,1,192], index: 4, kind: input, shape index: {}]
  %s5 = inlined_call_operand.vmem [shape: f32[3,64,64], index: 5, kind: input, shape index: {}]
  %s6 = inlined_call_operand.vmem [shape: f32[3,1,64], index: 6, kind: input, shape index: {}]
  %s7 = inlined_call_operand.vmem [shape: f32[3,1,64], index: 7, kind: input, shape index: {}]
  %s8 = inlined_call_operand.vmem [shape: f32[3,1,64], index: 8, kind: input, shape index: {}]
  %s9 = inlined_call_operand.vmem [shape: f32[3,1,64], index: 9, kind: input, shape index: {}]
  %s10 = inlined_call_operand.vmem [shape: f32[3,1,64], index: 10, kind: input, shape index: {}]
  %s11 = inlined_call_operand.hbm [shape: f32[3,64,128], index: 11, kind: input, shape index: {}]
  %s12 = inlined_call_operand.vmem [shape: f32[3,1,128], index: 12, kind: input, shape index: {}]
  %s13 = inlined_call_operand.vmem [shape: f32[3,128,64], index: 13, kind: input, shape index: {}]
  %s14 = inlined_call_operand.vmem [shape: f32[3,1,64], index: 14, kind: input, shape index: {}]
  %s15 = inlined_call_operand.vmem [shape: f32[64,4], index: 15, kind: input, shape index: {}]
  %s16 = inlined_call_operand.vmem [shape: f32[4,64], index: 16, kind: input, shape index: {}]
  %s17 = inlined_call_operand.vmem [shape: f32[64,64], index: 17, kind: input, shape index: {}]
  %s18 = inlined_call_operand.vmem [shape: f32[1,64], index: 18, kind: input, shape index: {}]
  %s19 = inlined_call_operand.vmem [shape: f32[64,2], index: 19, kind: input, shape index: {}]
  %s20 = inlined_call_operand.vmem [shape: f32[1,2], index: 20, kind: input, shape index: {}]
  %s21 = inlined_call_operand.hbm [shape: f32[2,2], index: 21, kind: output, shape index: {}]
  %s22 = sld [smem:[#allocation0]]
  $region98: #{tpu_custom_call.1} parent=0
    _
  %s24 = ssub.s32 1, %s22
  %s25 = scalar_select 0, %s24, %s22
  $region1: #{tpu_custom_call.1} parent=0
    #allocation2 [shape = 'u8[98304]{0}', space=vmem, size = 0x18000, scoped, tag = 'input window, operand 11, single buffered']
    #allocation3 [shape = 's32[1]{0}', space=sflag, size = 0x4, scoped, tag = 'scoped memory for tpu_custom_call.1']
    #allocation4 [shape = 's32[1]{0}', space=sflag, size = 0x4, scoped, tag = 'scoped memory for tpu_custom_call.1']
    #allocation5 [shape = 'u8[1024]{0}', space=vmem, size = 0x400, scoped, tag = 'output window, operand 0, single buffered']
    %26 = vsyncpa [#allocation3], 0
    %27 = vsyncpa [#allocation4], 0
    // Predicated region
    $region2: #{tpu_custom_call.1} parent=1 // pred_check
      _
    $region3: #{tpu_custom_call.1} parent=1 // pred_check_branch
      %29 = sbr.rel (0) target = $region5
    $region4: #{tpu_custom_call.1} parent=1 // pred_region
      _
    $region5: #{tpu_custom_call.1} parent=1 // pred_fallthru
      _
    // Predicated region
    $region6: #{tpu_custom_call.1} parent=1 // pred_check
      _
    $region7: #{tpu_custom_call.1} parent=1 // pred_check_branch
      %31 = sbr.rel (0) target = $region9
    $region8: #{tpu_custom_call.1} parent=1 // pred_region
      _
    $region9: #{tpu_custom_call.1} parent=1 // pred_fallthru
      _
    // Predicated region
    $region10: #{tpu_custom_call.1} parent=1 // pred_check
      _
    $region11: #{tpu_custom_call.1} parent=1 // pred_check_branch
      %33 = sbr.rel (0) target = $region13
    $region12: #{tpu_custom_call.1} parent=1 // pred_region
      _
    $region13: #{tpu_custom_call.1} parent=1 // pred_fallthru
      _
    // Predicated region
    $region14: #{tpu_custom_call.1} parent=1 // pred_check
      _
    $region15: #{tpu_custom_call.1} parent=1 // pred_check_branch
      %35 = sbr.rel (0) target = $region17
    $region16: #{tpu_custom_call.1} parent=1 // pred_region
      _
    $region17: #{tpu_custom_call.1} parent=1 // pred_fallthru
      _
    // Predicated region
    $region18: #{tpu_custom_call.1} parent=1 // pred_check
      _
    $region19: #{tpu_custom_call.1} parent=1 // pred_check_branch
      %37 = sbr.rel (0) target = $region21
    $region20: #{tpu_custom_call.1} parent=1 // pred_region
      _
    $region21: #{tpu_custom_call.1} parent=1 // pred_fallthru
      _
    // Predicated region
    $region22: #{tpu_custom_call.1} parent=1 // pred_check
      _
    $region23: #{tpu_custom_call.1} parent=1 // pred_check_branch
      %39 = sbr.rel (0) target = $region25
    $region24: #{tpu_custom_call.1} parent=1 // pred_region
      _
    $region25: #{tpu_custom_call.1} parent=1 // pred_fallthru
      _
    // Predicated region
    $region26: #{tpu_custom_call.1} parent=1 // pred_check
      _
    $region27: #{tpu_custom_call.1} parent=1 // pred_check_branch
      %41 = sbr.rel (0) target = $region29
    $region28: #{tpu_custom_call.1} parent=1 // pred_region
      _
    $region29: #{tpu_custom_call.1} parent=1 // pred_fallthru
      _
    // Predicated region
    $region30: #{tpu_custom_call.1} parent=1 // pred_check
      _
    $region31: #{tpu_custom_call.1} parent=1 // pred_check_branch
      %43 = sbr.rel (0) target = $region33
    $region32: #{tpu_custom_call.1} parent=1 // pred_region
      _
    $region33: #{tpu_custom_call.1} parent=1 // pred_fallthru
      _
    // Predicated region
    $region34: #{tpu_custom_call.1} parent=1 // pred_check
      _
    $region35: #{tpu_custom_call.1} parent=1 // pred_check_branch
      %45 = sbr.rel (0) target = $region37
    $region36: #{tpu_custom_call.1} parent=1 // pred_region
      _
    $region37: #{tpu_custom_call.1} parent=1 // pred_fallthru
      _
    // Predicated region
    $region38: #{tpu_custom_call.1} parent=1 // pred_check
      _
    $region39: #{tpu_custom_call.1} parent=1 // pred_check_branch
      %47 = sbr.rel (0) target = $region41
    $region40: #{tpu_custom_call.1} parent=1 // pred_region
      _
    $region41: #{tpu_custom_call.1} parent=1 // pred_fallthru
      _
    // Predicated region
    $region42: #{tpu_custom_call.1} parent=1 // pred_check
      _
    $region43: #{tpu_custom_call.1} parent=1 // pred_check_branch
      %49 = sbr.rel (0) target = $region45
    $region44: #{tpu_custom_call.1} parent=1 // pred_region
      _
    $region45: #{tpu_custom_call.1} parent=1 // pred_fallthru
      _
    // Predicated region
    $region46: #{tpu_custom_call.1} parent=1 // pred_check
      _
    $region47: #{tpu_custom_call.1} parent=1 // pred_check_branch
      %51 = sbr.rel (0) target = $region49
    $region48: #{tpu_custom_call.1} parent=1 // pred_region
      %s53 = ssub.s32 3072, 3072
      %54 = vsyncadd [#allocation3], %s53
      %s55 = sshll.u32 [#allocation2], 4
      %s56 = int_to_ptr.vmem [resolvable:$true] %s55
      %61 = dma.hbm_to_vmem [thread:$0]  %s11, 3072, %s56, [#allocation3], 128, 128, 8
    $region49: #{tpu_custom_call.1} parent=1 // pred_fallthru
      _
    // Predicated region
    $region50: #{tpu_custom_call.1} parent=1 // pred_check
      _
    $region51: #{tpu_custom_call.1} parent=1 // pred_check_branch
      %63 = sbr.rel (0) target = $region53
    $region52: #{tpu_custom_call.1} parent=1 // pred_region
      _
    $region53: #{tpu_custom_call.1} parent=1 // pred_fallthru
      _
    // Predicated region
    $region54: #{tpu_custom_call.1} parent=1 // pred_check
      _
    $region55: #{tpu_custom_call.1} parent=1 // pred_check_branch
      %65 = sbr.rel (0) target = $region57
    $region56: #{tpu_custom_call.1} parent=1 // pred_region
      _
    $region57: #{tpu_custom_call.1} parent=1 // pred_fallthru
      _
    // Predicated region
    $region58: #{tpu_custom_call.1} parent=1 // pred_check
      _
    $region59: #{tpu_custom_call.1} parent=1 // pred_check_branch
      %67 = sbr.rel (0) target = $region61
    $region60: #{tpu_custom_call.1} parent=1 // pred_region
      _
    $region61: #{tpu_custom_call.1} parent=1 // pred_fallthru
      _
    // Predicated region
    $region62: #{tpu_custom_call.1} parent=1 // pred_check
      _
    $region63: #{tpu_custom_call.1} parent=1 // pred_check_branch
      %69 = sbr.rel (0) target = $region65
    $region64: #{tpu_custom_call.1} parent=1 // pred_region
      _
    $region65: #{tpu_custom_call.1} parent=1 // pred_fallthru
      _
    // Predicated region
    $region66: #{tpu_custom_call.1} parent=1 // pred_check
      _
    $region67: #{tpu_custom_call.1} parent=1 // pred_check_branch
      %71 = sbr.rel (0) target = $region69
    $region68: #{tpu_custom_call.1} parent=1 // pred_region
      _
    $region69: #{tpu_custom_call.1} parent=1 // pred_fallthru
      _
    // Predicated region
    $region70: #{tpu_custom_call.1} parent=1 // pred_check
      _
    $region71: #{tpu_custom_call.1} parent=1 // pred_check_branch
      %73 = sbr.rel (0) target = $region73
    $region72: #{tpu_custom_call.1} parent=1 // pred_region
      _
    $region73: #{tpu_custom_call.1} parent=1 // pred_fallthru
      _
    // Predicated region
    $region74: #{tpu_custom_call.1} parent=1 // pred_check
      _
    $region75: #{tpu_custom_call.1} parent=1 // pred_check_branch
      %75 = sbr.rel (0) target = $region77
    $region76: #{tpu_custom_call.1} parent=1 // pred_region
      _
    $region77: #{tpu_custom_call.1} parent=1 // pred_fallthru
      _
    // Predicated region
    $region78: #{tpu_custom_call.1} parent=1 // pred_check
      _
    $region79: #{tpu_custom_call.1} parent=1 // pred_check_branch
      %77 = sbr.rel (0) target = $region81
    $region80: #{tpu_custom_call.1} parent=1 // pred_region
      _
    $region81: #{tpu_custom_call.1} parent=1 // pred_fallthru
      _
    // Predicated region
    $region82: #{tpu_custom_call.1} parent=1 // pred_check
      _
    $region83: #{tpu_custom_call.1} parent=1 // pred_check_branch
      %79 = sbr.rel (0) target = $region85
    $region84: #{tpu_custom_call.1} parent=1 // pred_region
      _
    $region85: #{tpu_custom_call.1} parent=1 // pred_fallthru
      _
    // Predicated region
    $region86: #{tpu_custom_call.1} parent=1 // pred_check
      _
    $region87: #{tpu_custom_call.1} parent=1 // pred_check_branch
      %81 = sbr.rel (0) target = $region89
    $region88: #{tpu_custom_call.1} parent=1 // pred_region
      %82 = dma.done [#allocation3], 3072
    $region89: #{tpu_custom_call.1} parent=1 // pred_fallthru
      _
    %v84 = vld [vmem:[%s15] sm:$0xff]
    %v85 = vld [vmem:[%s15 + $0x8] sm:$0xff]
    %v86 = vld [vmem:[%s15 + $0x10] sm:$0xff]
    %v87 = vld [vmem:[%s15 + $0x18] sm:$0xff]
    %v88 = vld [vmem:[%s15 + $0x20] sm:$0xff]
    %v89 = vld [vmem:[%s15 + $0x28] sm:$0xff]
    %v90 = vld [vmem:[%s15 + $0x30] sm:$0xff]
    %v91 = vld [vmem:[%s15 + $0x38] sm:$0xff]
    %v92 = vld [vmem:[%s16] sm:$0xf]
    %v93 = vld [vmem:[%s0] sm:$0xff]
    %v94 = vld [vmem:[%s0 + $0x8] sm:$0xff]
    %v95 = vld [vmem:[%s1] sm:$0xff]
    %v96 = vld [vmem:[%s1 + $0x8] sm:$0xff]
    %v97 = vpack.c.bf16 %v94, %v93
    %v98 = vpack.c.bf16 %v96, %v95
    %v99 = vld [vmem:[%s2] sm:$0xff]
    %v100 = vld [vmem:[%s2 + $0x8] sm:$0xff]
    %vm101 = vcmask 130048
    %v103 = vsel %vm101, %v97, 0
    %105 = vmatprep.subr.bf16.mxu0 0
    %106 = vmatpush1.bf16.msra.mxu0 %v98
    %107 = vmatprep.subr.bf16.mxu0 0
    %108 = vmatpush1.bf16.msra.mxu0 0
    %109 = vmatprep.subr.bf16.mxu0 0
    %110 = vmatpush1.bf16.msra.mxu0 0
    %111 = vmatprep.subr.bf16.mxu0 0
    %112 = vmatpush1.bf16.msra.mxu0 0
    %113 = vmatprep.subr.bf16.mxu0 0
    %114 = vmatpush1.bf16.msra.mxu0 0
    %115 = vmatprep.subr.bf16.mxu0 0
    %116 = vmatpush1.bf16.msra.mxu0 0
    %117 = vmatprep.subr.bf16.mxu0 0
    %118 = vmatpush1.bf16.msra.mxu0 0
    %119 = vmatprep.subr.bf16.mxu0 0
    %120 = vmatpush1.bf16.msra.mxu0 0
    %121 = vmatprep.subr.bf16.mxu0 0
    %122 = vmatpush1.bf16.msra.mxu0 0
    %123 = vmatprep.subr.bf16.mxu0 0
    %124 = vmatpush1.bf16.msra.mxu0 0
    %125 = vmatprep.subr.bf16.mxu0 0
    %126 = vmatpush1.bf16.msra.mxu0 0
    %127 = vmatprep.subr.bf16.mxu0 0
    %128 = vmatpush1.bf16.msra.mxu0 0
    %129 = vmatprep.subr.bf16.mxu0 0
    %130 = vmatpush1.bf16.msra.mxu0 0
    %131 = vmatprep.subr.bf16.mxu0 0
    %132 = vmatpush1.bf16.msra.mxu0 0
    %133 = vmatprep.subr.bf16.mxu0 0
    %134 = vmatpush1.bf16.msra.mxu0 0
    %135 = vmatprep.subr.bf16.mxu0 0
    %136 = vmatpush1.bf16.msra.mxu0 0
    %137 = vmatprep.mubr.bf16.mxu0 0
    %138 = vmatmul.mubr.bf16.gmra.mrb[0].mxu0 %v103
    %v139 = vpop.f32.mrb[0].mxu0
    %v140 = vadd.f32 %v99, %v139
    %v141 = vpop.f32.mrb[0].mxu0
    %v142 = vpop.f32.mrb[0].mxu0
    %v143 = vadd.f32 %v100, %v142
    %v144 = vpop.f32.mrb[0].mxu0
    %145 = vdwg.mxu0
    %v146 = vld [vmem:[%s3] sm:$0xff]
    %v147 = vld [vmem:[%s3 + $0x8] sm:$0xff]
    %v148 = vld [vmem:[%s3 + $0x10] sm:$0xff]
    %v149 = vld [vmem:[%s3 + $0x18] sm:$0xff]
    %v150 = vld [vmem:[%s3 + $0x20] sm:$0xff]
    %v151 = vld [vmem:[%s3 + $0x28] sm:$0xff]
    %v152 = vld [vmem:[%s3 + $0x30] sm:$0xff]
    %v153 = vld [vmem:[%s3 + $0x38] sm:$0xff]
    %v154 = vld [vmem:[%s3 + $0x40] sm:$0xff]
    %v155 = vld [vmem:[%s3 + $0x48] sm:$0xff]
    %v156 = vld [vmem:[%s3 + $0x50] sm:$0xff]
    %v157 = vld [vmem:[%s3 + $0x58] sm:$0xff]
    %v158 = vld [vmem:[%s3 + $0x60] sm:$0xff]
    %v159 = vld [vmem:[%s3 + $0x68] sm:$0xff]
    %v160 = vld [vmem:[%s3 + $0x70] sm:$0xff]
    %v161 = vld [vmem:[%s3 + $0x78] sm:$0xff]
    %v162 = vpack.c.bf16 %v143, %v140
    %v163 = vpack.c.bf16 %v148, %v146
    %v164 = vpack.c.bf16 %v149, %v147
    %v165 = vpack.c.bf16 %v152, %v150
    %v166 = vpack.c.bf16 %v153, %v151
    %v167 = vpack.c.bf16 %v156, %v154
    %v168 = vpack.c.bf16 %v157, %v155
    %v169 = vpack.c.bf16 %v160, %v158
    %v170 = vpack.c.bf16 %v161, %v159
    %v171 = vld [vmem:[%s4] sm:$0x3]
    %v173 = vlaneseq
    %v174 = vshrl.u32 %v173, 7
    %v175 = vsub.s32 0, %v174
    %v176 = vrot.slane %v171, %v175
    %v177 = vlaneseq
    %v178 = vshrl.u32 %v177, 7
    %v179 = vsub.s32 1, %v178
    %v180 = vrot.slane %v171, %v179
    %vm183 = vcmask 523264
    %v185 = vsel %vm183, %v162, 0
    %187 = vmatprep.subr.bf16.mxu0 %v164
    %188 = vmatpush1.bf16.msra.mxu0 %v163
    %189 = vmatprep.subr.bf16.mxu0 %v166
    %190 = vmatpush1.bf16.msra.mxu0 %v165
    %191 = vmatprep.subr.bf16.mxu0 %v168
    %192 = vmatpush1.bf16.msra.mxu0 %v167
    %193 = vmatprep.subr.bf16.mxu0 %v170
    %194 = vmatpush1.bf16.msra.mxu0 %v169
    %195 = vmatprep.subr.bf16.mxu0 0
    %196 = vmatpush1.bf16.msra.mxu0 0
    %197 = vmatprep.subr.bf16.mxu0 0
    %198 = vmatpush1.bf16.msra.mxu0 0
    %199 = vmatprep.subr.bf16.mxu0 0
    %200 = vmatpush1.bf16.msra.mxu0 0
    %201 = vmatprep.subr.bf16.mxu0 0
    %202 = vmatpush1.bf16.msra.mxu0 0
    %203 = vmatprep.subr.bf16.mxu0 0
    %204 = vmatpush1.bf16.msra.mxu0 0
    %205 = vmatprep.subr.bf16.mxu0 0
    %206 = vmatpush1.bf16.msra.mxu0 0
    %207 = vmatprep.subr.bf16.mxu0 0
    %208 = vmatpush1.bf16.msra.mxu0 0
    %209 = vmatprep.subr.bf16.mxu0 0
    %210 = vmatpush1.bf16.msra.mxu0 0
    %211 = vmatprep.subr.bf16.mxu0 0
    %212 = vmatpush1.bf16.msra.mxu0 0
    %213 = vmatprep.subr.bf16.mxu0 0
    %214 = vmatpush1.bf16.msra.mxu0 0
    %215 = vmatprep.subr.bf16.mxu0 0
    %216 = vmatpush1.bf16.msra.mxu0 0
    %217 = vmatprep.subr.bf16.mxu0 0
    %218 = vmatpush1.bf16.msra.mxu0 0
    %219 = vmatprep.mubr.bf16.mxu0 0
    %220 = vmatmul.mubr.bf16.gmra.mrb[0].mxu0 %v185
    %v221 = vpop.f32.mrb[0].mxu0
    %v222 = vadd.f32 %v176, %v221
    %v223 = vpop.f32.mrb[0].mxu0
    %v224 = vadd.f32 %v180, %v223
    %v225 = vpop.f32.mrb[0].mxu0
    %v226 = vadd.f32 %v176, %v225
    %v227 = vpop.f32.mrb[0].mxu0
    %v228 = vadd.f32 %v180, %v227
    %229 = vdwg.mxu0
    %232 = vrot.lane.b32.xlu0 %v222, 64
    %v233 = vpop.permute.xlu0 %232
    %234 = vrot.lane.b32.xlu0 %v226, 64
    %v235 = vpop.permute.xlu0 %234
    %v238 = vmul.f32 %v222, %v233
    %v239 = vmul.f32 %v226, %v235
    %v240 = vmul.f32 %v222, %v235
    %v241 = vmul.f32 %v226, %v233
    %v242 = vpack.c.bf16 %v239, %v238
    %v243 = vpack.c.bf16 %v241, %v240
    %v244 = vpack.c.bf16 %v85, %v84
    %v245 = vpack.c.bf16 %v87, %v86
    %v246 = vpack.c.bf16 %v89, %v88
    %v247 = vpack.c.bf16 %v91, %v90
    %v249 = vsel %vm183, %v242, 0
    %v252 = vsel %vm183, %v243, 0
    %254 = vmatprep.subr.bf16.mxu0 0
    %255 = vmatpush1.bf16.msra.mxu0 %v244
    %256 = vmatprep.subr.bf16.mxu0 0
    %257 = vmatpush1.bf16.msra.mxu0 %v245
    %258 = vmatprep.subr.bf16.mxu0 0
    %259 = vmatpush1.bf16.msra.mxu0 %v246
    %260 = vmatprep.subr.bf16.mxu0 0
    %261 = vmatpush1.bf16.msra.mxu0 %v247
    %262 = vmatprep.subr.bf16.mxu0 0
    %263 = vmatpush1.bf16.msra.mxu0 0
    %264 = vmatprep.subr.bf16.mxu0 0
    %265 = vmatpush1.bf16.msra.mxu0 0
    %266 = vmatprep.subr.bf16.mxu0 0
    %267 = vmatpush1.bf16.msra.mxu0 0
    %268 = vmatprep.subr.bf16.mxu0 0
    %269 = vmatpush1.bf16.msra.mxu0 0
    %270 = vmatprep.subr.bf16.mxu0 0
    %271 = vmatpush1.bf16.msra.mxu0 0
    %272 = vmatprep.subr.bf16.mxu0 0
    %273 = vmatpush1.bf16.msra.mxu0 0
    %274 = vmatprep.subr.bf16.mxu0 0
    %275 = vmatpush1.bf16.msra.mxu0 0
    %276 = vmatprep.subr.bf16.mxu0 0
    %277 = vmatpush1.bf16.msra.mxu0 0
    %278 = vmatprep.subr.bf16.mxu0 0
    %279 = vmatpush1.bf16.msra.mxu0 0
    %280 = vmatprep.subr.bf16.mxu0 0
    %281 = vmatpush1.bf16.msra.mxu0 0
    %282 = vmatprep.subr.bf16.mxu0 0
    %283 = vmatpush1.bf16.msra.mxu0 0
    %284 = vmatprep.subr.bf16.mxu0 0
    %285 = vmatpush1.bf16.msra.mxu0 0
    %286 = vmatprep.mubr.bf16.mxu0 0
    %287 = vmatmul.mubr.bf16.gmra.mrb[0].mxu0 %v249
    %v288 = vpop.f32.mrb[0].mxu0
    %v289 = vadd.f32 0.0, %v288
    %v290 = vpop.f32.mrb[0].mxu0
    %v291 = vpop.f32.mrb[0].mxu0
    %v292 = vadd.f32 0.0, %v291
    %v293 = vpop.f32.mrb[0].mxu0
    %294 = vmatprep.mubr.bf16.mxu0 0
    %295 = vmatmul.mubr.bf16.gmra.mrb[0].mxu0 %v252
    %v296 = vpop.f32.mrb[0].mxu0
    %v297 = vadd.f32 0.0, %v296
    %v298 = vpop.f32.mrb[0].mxu0
    %v299 = vpop.f32.mrb[0].mxu0
    %v300 = vadd.f32 0.0, %v299
    %v301 = vpop.f32.mrb[0].mxu0
    %302 = vdwg.mxu0
    %v303 = vsub.f32 %v297, %v289
    %v304 = vsub.f32 %v300, %v292
    %v305 = vmul.f32 %v303, 1.442695
    %v306 = vpow.pop %v305
    %v307 = vmul.f32 %v304, 1.442695
    %v308 = vpow.pop %v307
    %v309 = vadd.f32 %v306, 1.0
    %v310 = vadd.f32 %v308, 1.0
    %v311 = vrcp.pop %v309
    %v312 = vrcp.pop %v310
    %v313 = vsub.f32 1.0, %v311
    %v314 = vsub.f32 1.0, %v312
    %v315 = vpack.c.bf16 %v312, %v311
    %v316 = vpack.c.bf16 %v314, %v313
    %v317 = vpack.c.bf16 %v92, %v92
    %vm318 = vcmask 31744
    %v320 = vsel %vm318, %v315, 0
    %v323 = vsel %vm318, %v316, 0
    %vm325 = vcmask 1041408
    %v327 = vsel %vm325, %v317, 0
    %329 = vmatprep.subr.bf16.mxu0 0
    %330 = vmatpush1.bf16.msra.mxu0 %v327
    %331 = vmatprep.subr.bf16.mxu0 0
    %332 = vmatpush1.bf16.msra.mxu0 0
    %333 = vmatprep.subr.bf16.mxu0 0
    %334 = vmatpush1.bf16.msra.mxu0 0
    %335 = vmatprep.subr.bf16.mxu0 0
    %336 = vmatpush1.bf16.msra.mxu0 0
    %337 = vmatprep.subr.bf16.mxu0 0
    %338 = vmatpush1.bf16.msra.mxu0 0
    %339 = vmatprep.subr.bf16.mxu0 0
    %340 = vmatpush1.bf16.msra.mxu0 0
    %341 = vmatprep.subr.bf16.mxu0 0
    %342 = vmatpush1.bf16.msra.mxu0 0
    %343 = vmatprep.subr.bf16.mxu0 0
    %344 = vmatpush1.bf16.msra.mxu0 0
    %345 = vmatprep.subr.bf16.mxu0 0
    %346 = vmatpush1.bf16.msra.mxu0 0
    %347 = vmatprep.subr.bf16.mxu0 0
    %348 = vmatpush1.bf16.msra.mxu0 0
    %349 = vmatprep.subr.bf16.mxu0 0
    %350 = vmatpush1.bf16.msra.mxu0 0
    %351 = vmatprep.subr.bf16.mxu0 0
    %352 = vmatpush1.bf16.msra.mxu0 0
    %353 = vmatprep.subr.bf16.mxu0 0
    %354 = vmatpush1.bf16.msra.mxu0 0
    %355 = vmatprep.subr.bf16.mxu0 0
    %356 = vmatpush1.bf16.msra.mxu0 0
    %357 = vmatprep.subr.bf16.mxu0 0
    %358 = vmatpush1.bf16.msra.mxu0 0
    %359 = vmatprep.subr.bf16.mxu0 0
    %360 = vmatpush1.bf16.msra.mxu0 0
    %361 = vmatprep.mubr.bf16.mxu0 0
    %362 = vmatmul.mubr.bf16.gmra.mrb[0].mxu0 %v320
    %v363 = vpop.f32.mrb[0].mxu0
    %v364 = vadd.f32 0.0, %v363
    %v365 = vpop.f32.mrb[0].mxu0
    %v366 = vpop.f32.mrb[0].mxu0
    %v367 = vadd.f32 0.0, %v366
    %v368 = vpop.f32.mrb[0].mxu0
    %369 = vmatprep.mubr.bf16.mxu0 0
    %370 = vmatmul.mubr.bf16.gmra.mrb[0].mxu0 %v323
    %v371 = vpop.f32.mrb[0].mxu0
    %v372 = vadd.f32 0.0, %v371
    %v373 = vpop.f32.mrb[0].mxu0
    %v374 = vpop.f32.mrb[0].mxu0
    %v375 = vadd.f32 0.0, %v374
    %v376 = vpop.f32.mrb[0].mxu0
    %377 = vdwg.mxu0
    %v378 = vmul.f32 %v364, %v224
    %v379 = vmul.f32 %v367, %v228
    %v380 = vmul.f32 %v372, %v228
    %v381 = vmul.f32 %v375, %v224
    %v382 = vadd.f32 %v378, %v380
    %v383 = vadd.f32 %v379, %v381
    %v384 = vld [vmem:[%s5] sm:$0xff]
    %v385 = vld [vmem:[%s5 + $0x8] sm:$0xff]
    %v386 = vld [vmem:[%s5 + $0x10] sm:$0xff]
    %v387 = vld [vmem:[%s5 + $0x18] sm:$0xff]
    %v388 = vld [vmem:[%s5 + $0x20] sm:$0xff]
    %v389 = vld [vmem:[%s5 + $0x28] sm:$0xff]
    %v390 = vld [vmem:[%s5 + $0x30] sm:$0xff]
    %v391 = vld [vmem:[%s5 + $0x38] sm:$0xff]
    %v392 = vpack.c.bf16 %v383, %v382
    %v393 = vpack.c.bf16 %v385, %v384
    %v394 = vpack.c.bf16 %v387, %v386
    %v395 = vpack.c.bf16 %v389, %v388
    %v396 = vpack.c.bf16 %v391, %v390
    %v397 = vld [vmem:[%s6] sm:$0x1]
    %v399 = vlaneseq
    %v400 = vshrl.u32 %v399, 7
    %v401 = vsub.s32 0, %v400
    %v402 = vrot.slane %v397, %v401
    %v405 = vsel %vm183, %v392, 0
    %407 = vmatprep.subr.bf16.mxu0 0
    %408 = vmatpush1.bf16.msra.mxu0 %v393
    %409 = vmatprep.subr.bf16.mxu0 0
    %410 = vmatpush1.bf16.msra.mxu0 %v394
    %411 = vmatprep.subr.bf16.mxu0 0
    %412 = vmatpush1.bf16.msra.mxu0 %v395
    %413 = vmatprep.subr.bf16.mxu0 0
    %414 = vmatpush1.bf16.msra.mxu0 %v396
    %415 = vmatprep.subr.bf16.mxu0 0
    %416 = vmatpush1.bf16.msra.mxu0 0
    %417 = vmatprep.subr.bf16.mxu0 0
    %418 = vmatpush1.bf16.msra.mxu0 0
    %419 = vmatprep.subr.bf16.mxu0 0
    %420 = vmatpush1.bf16.msra.mxu0 0
    %421 = vmatprep.subr.bf16.mxu0 0
    %422 = vmatpush1.bf16.msra.mxu0 0
    %423 = vmatprep.subr.bf16.mxu0 0
    %424 = vmatpush1.bf16.msra.mxu0 0
    %425 = vmatprep.subr.bf16.mxu0 0
    %426 = vmatpush1.bf16.msra.mxu0 0
    %427 = vmatprep.subr.bf16.mxu0 0
    %428 = vmatpush1.bf16.msra.mxu0 0
    %429 = vmatprep.subr.bf16.mxu0 0
    %430 = vmatpush1.bf16.msra.mxu0 0
    %431 = vmatprep.subr.bf16.mxu0 0
    %432 = vmatpush1.bf16.msra.mxu0 0
    %433 = vmatprep.subr.bf16.mxu0 0
    %434 = vmatpush1.bf16.msra.mxu0 0
    %435 = vmatprep.subr.bf16.mxu0 0
    %436 = vmatpush1.bf16.msra.mxu0 0
    %437 = vmatprep.subr.bf16.mxu0 0
    %438 = vmatpush1.bf16.msra.mxu0 0
    %439 = vmatprep.mubr.bf16.mxu0 0
    %440 = vmatmul.mubr.bf16.gmra.mrb[0].mxu0 %v405
    %v441 = vpop.f32.mrb[0].mxu0
    %v442 = vadd.f32 %v402, %v441
    %v443 = vpop.f32.mrb[0].mxu0
    %v444 = vpop.f32.mrb[0].mxu0
    %v445 = vadd.f32 %v402, %v444
    %v446 = vpop.f32.mrb[0].mxu0
    %447 = vdwg.mxu0
    %v448 = vadd.f32 %v140, %v442
    %v449 = vadd.f32 %v143, %v445
    %v450 = vld [vmem:[%s7] sm:$0x1]
    %v451 = vld [vmem:[%s8] sm:$0x1]
    %v452 = vsel %vm183, %v448, 0.0
    %453 = vadd.xlane.f32.xlu0 %v452
    %v454 = vpop.xlane.xlu0 %453
    %v455 = vsel %vm183, %v449, 0.0
    %456 = vadd.xlane.f32.xlu0 %v455
    %v457 = vpop.xlane.xlu0 %456
    %v458 = vrcp.pop 64.0
    %v459 = vmul.f32 %v454, %v458
    %v460 = vmul.f32 %v457, %v458
    %v461 = vsub.f32 %v448, %v459
    %v462 = vsub.f32 %v449, %v460
    %v463 = vmul.f32 %v461, %v461
    %v464 = vmul.f32 %v462, %v462
    %v465 = vsel %vm183, %v463, 0.0
    %466 = vadd.xlane.f32.xlu0 %v465
    %v467 = vpop.xlane.xlu0 %466
    %v468 = vsel %vm183, %v464, 0.0
    %469 = vadd.xlane.f32.xlu0 %v468
    %v470 = vpop.xlane.xlu0 %469
    %v471 = vmul.f32 %v467, %v458
    %v472 = vmul.f32 %v470, %v458
    %v473 = vadd.f32 %v471, 1e-05
    %v474 = vadd.f32 %v472, 1e-05
    %v475 = vrsqrt.pop %v473
    %v476 = vrsqrt.pop %v474
    %v477 = vmul.f32 %v461, %v475
    %v478 = vmul.f32 %v462, %v476
    %v480 = vlaneseq
    %v481 = vshrl.u32 %v480, 7
    %v482 = vsub.s32 0, %v481
    %v483 = vrot.slane %v450, %v482
    %v485 = vmul.f32 %v477, %v483
    %v486 = vmul.f32 %v478, %v483
    %v488 = vlaneseq
    %v489 = vshrl.u32 %v488, 7
    %v490 = vsub.s32 0, %v489
    %v491 = vrot.slane %v451, %v490
    %v493 = vadd.f32 %v485, %v491
    %v494 = vadd.f32 %v486, %v491
    %v495 = vld [vmem:[#allocation2] sm:$0xff]
    %v496 = vld [vmem:[#allocation2 + $0x8] sm:$0xff]
    %v497 = vld [vmem:[#allocation2 + $0x10] sm:$0xff]
    %v498 = vld [vmem:[#allocation2 + $0x18] sm:$0xff]
    %v499 = vld [vmem:[#allocation2 + $0x20] sm:$0xff]
    %v500 = vld [vmem:[#allocation2 + $0x28] sm:$0xff]
    %v501 = vld [vmem:[#allocation2 + $0x30] sm:$0xff]
    %v502 = vld [vmem:[#allocation2 + $0x38] sm:$0xff]
    %v503 = vpack.c.bf16 %v494, %v493
    %v504 = vpack.c.bf16 %v496, %v495
    %v505 = vpack.c.bf16 %v498, %v497
    %v506 = vpack.c.bf16 %v500, %v499
    %v507 = vpack.c.bf16 %v502, %v501
    %v508 = vld [vmem:[%s12] sm:$0x1]
    %v510 = vlaneseq
    %v511 = vshrl.u32 %v510, 7
    %v512 = vsub.s32 0, %v511
    %v513 = vrot.slane %v508, %v512
    %v516 = vsel %vm183, %v503, 0
    %518 = vmatprep.subr.bf16.mxu0 0
    %519 = vmatpush1.bf16.msra.mxu0 %v504
    %520 = vmatprep.subr.bf16.mxu0 0
    %521 = vmatpush1.bf16.msra.mxu0 %v505
    %522 = vmatprep.subr.bf16.mxu0 0
    %523 = vmatpush1.bf16.msra.mxu0 %v506
    %524 = vmatprep.subr.bf16.mxu0 0
    %525 = vmatpush1.bf16.msra.mxu0 %v507
    %526 = vmatprep.subr.bf16.mxu0 0
    %527 = vmatpush1.bf16.msra.mxu0 0
    %528 = vmatprep.subr.bf16.mxu0 0
    %529 = vmatpush1.bf16.msra.mxu0 0
    %530 = vmatprep.subr.bf16.mxu0 0
    %531 = vmatpush1.bf16.msra.mxu0 0
    %532 = vmatprep.subr.bf16.mxu0 0
    %533 = vmatpush1.bf16.msra.mxu0 0
    %534 = vmatprep.subr.bf16.mxu0 0
    %535 = vmatpush1.bf16.msra.mxu0 0
    %536 = vmatprep.subr.bf16.mxu0 0
    %537 = vmatpush1.bf16.msra.mxu0 0
    %538 = vmatprep.subr.bf16.mxu0 0
    %539 = vmatpush1.bf16.msra.mxu0 0
    %540 = vmatprep.subr.bf16.mxu0 0
    %541 = vmatpush1.bf16.msra.mxu0 0
    %542 = vmatprep.subr.bf16.mxu0 0
    %543 = vmatpush1.bf16.msra.mxu0 0
    %544 = vmatprep.subr.bf16.mxu0 0
    %545 = vmatpush1.bf16.msra.mxu0 0
    %546 = vmatprep.subr.bf16.mxu0 0
    %547 = vmatpush1.bf16.msra.mxu0 0
    %548 = vmatprep.subr.bf16.mxu0 0
    %549 = vmatpush1.bf16.msra.mxu0 0
    %550 = vmatprep.mubr.bf16.mxu0 0
    %551 = vmatmul.mubr.bf16.gmra.mrb[0].mxu0 %v516
    %v552 = vpop.f32.mrb[0].mxu0
    %v553 = vadd.f32 %v513, %v552
    %v554 = vpop.f32.mrb[0].mxu0
    %v555 = vpop.f32.mrb[0].mxu0
    %v556 = vadd.f32 %v513, %v555
    %v557 = vpop.f32.mrb[0].mxu0
    %558 = vdwg.mxu0
    %v559 = vmax.f32 %v553, 0.0
    %v560 = vmax.f32 %v556, 0.0
    %v561 = vld [vmem:[%s13] sm:$0xff]
    %v562 = vld [vmem:[%s13 + $0x8] sm:$0xff]
    %v563 = vld [vmem:[%s13 + $0x10] sm:$0xff]
    %v564 = vld [vmem:[%s13 + $0x18] sm:$0xff]
    %v565 = vld [vmem:[%s13 + $0x20] sm:$0xff]
    %v566 = vld [vmem:[%s13 + $0x28] sm:$0xff]
    %v567 = vld [vmem:[%s13 + $0x30] sm:$0xff]
    %v568 = vld [vmem:[%s13 + $0x38] sm:$0xff]
    %v569 = vld [vmem:[%s13 + $0x40] sm:$0xff]
    %v570 = vld [vmem:[%s13 + $0x48] sm:$0xff]
    %v571 = vld [vmem:[%s13 + $0x50] sm:$0xff]
    %v572 = vld [vmem:[%s13 + $0x58] sm:$0xff]
    %v573 = vld [vmem:[%s13 + $0x60] sm:$0xff]
    %v574 = vld [vmem:[%s13 + $0x68] sm:$0xff]
    %v575 = vld [vmem:[%s13 + $0x70] sm:$0xff]
    %v576 = vld [vmem:[%s13 + $0x78] sm:$0xff]
    %v577 = vpack.c.bf16 %v560, %v559
    %v578 = vpack.c.bf16 %v562, %v561
    %v579 = vpack.c.bf16 %v564, %v563
    %v580 = vpack.c.bf16 %v566, %v565
    %v581 = vpack.c.bf16 %v568, %v567
    %v582 = vpack.c.bf16 %v570, %v569
    %v583 = vpack.c.bf16 %v572, %v571
    %v584 = vpack.c.bf16 %v574, %v573
    %v585 = vpack.c.bf16 %v576, %v575
    %v586 = vld [vmem:[%s14] sm:$0x1]
    %v588 = vlaneseq
    %v589 = vshrl.u32 %v588, 7
    %v590 = vsub.s32 0, %v589
    %v591 = vrot.slane %v586, %v590
    %593 = vmatprep.subr.bf16.mxu0 0
    %594 = vmatpush1.bf16.msra.mxu0 %v578
    %595 = vmatprep.subr.bf16.mxu0 0
    %596 = vmatpush1.bf16.msra.mxu0 %v579
    %597 = vmatprep.subr.bf16.mxu0 0
    %598 = vmatpush1.bf16.msra.mxu0 %v580
    %599 = vmatprep.subr.bf16.mxu0 0
    %600 = vmatpush1.bf16.msra.mxu0 %v581
    %601 = vmatprep.subr.bf16.mxu0 0
    %602 = vmatpush1.bf16.msra.mxu0 %v582
    %603 = vmatprep.subr.bf16.mxu0 0
    %604 = vmatpush1.bf16.msra.mxu0 %v583
    %605 = vmatprep.subr.bf16.mxu0 0
    %606 = vmatpush1.bf16.msra.mxu0 %v584
    %607 = vmatprep.subr.bf16.mxu0 0
    %608 = vmatpush1.bf16.msra.mxu0 %v585
    %609 = vmatprep.subr.bf16.mxu0 0
    %610 = vmatpush1.bf16.msra.mxu0 0
    %611 = vmatprep.subr.bf16.mxu0 0
    %612 = vmatpush1.bf16.msra.mxu0 0
    %613 = vmatprep.subr.bf16.mxu0 0
    %614 = vmatpush1.bf16.msra.mxu0 0
    %615 = vmatprep.subr.bf16.mxu0 0
    %616 = vmatpush1.bf16.msra.mxu0 0
    %617 = vmatprep.subr.bf16.mxu0 0
    %618 = vmatpush1.bf16.msra.mxu0 0
    %619 = vmatprep.subr.bf16.mxu0 0
    %620 = vmatpush1.bf16.msra.mxu0 0
    %621 = vmatprep.subr.bf16.mxu0 0
    %622 = vmatpush1.bf16.msra.mxu0 0
    %623 = vmatprep.subr.bf16.mxu0 0
    %624 = vmatpush1.bf16.msra.mxu0 0
    %625 = vmatprep.mubr.bf16.mxu0 0
    %626 = vmatmul.mubr.bf16.gmra.mrb[0].mxu0 %v577
    %v627 = vpop.f32.mrb[0].mxu0
    %v628 = vadd.f32 %v591, %v627
    %v629 = vpop.f32.mrb[0].mxu0
    %v630 = vpop.f32.mrb[0].mxu0
    %v631 = vadd.f32 %v591, %v630
    %v632 = vpop.f32.mrb[0].mxu0
    %633 = vdwg.mxu0
    %v634 = vadd.f32 %v493, %v628
    %v635 = vadd.f32 %v494, %v631
    %v636 = vld [vmem:[%s9] sm:$0x1]
    %v637 = vld [vmem:[%s10] sm:$0x1]
    %v638 = vsel %vm183, %v634, 0.0
    %639 = vadd.xlane.f32.xlu0 %v638
    %v640 = vpop.xlane.xlu0 %639
    %v641 = vsel %vm183, %v635, 0.0
    %642 = vadd.xlane.f32.xlu0 %v641
    %v643 = vpop.xlane.xlu0 %642
    %v644 = vmul.f32 %v640, %v458
    %v645 = vmul.f32 %v643, %v458
    %v646 = vsub.f32 %v634, %v644
    %v647 = vsub.f32 %v635, %v645
    %v648 = vmul.f32 %v646, %v646
    %v649 = vmul.f32 %v647, %v647
    %v650 = vsel %vm183, %v648, 0.0
    %651 = vadd.xlane.f32.xlu0 %v650
    %v652 = vpop.xlane.xlu0 %651
    %v653 = vsel %vm183, %v649, 0.0
    %654 = vadd.xlane.f32.xlu0 %v653
    %v655 = vpop.xlane.xlu0 %654
    %v656 = vmul.f32 %v652, %v458
    %v657 = vmul.f32 %v655, %v458
    %v658 = vadd.f32 %v656, 1e-05
    %v659 = vadd.f32 %v657, 1e-05
    %v660 = vrsqrt.pop %v658
    %v661 = vrsqrt.pop %v659
    %v662 = vmul.f32 %v646, %v660
    %v663 = vmul.f32 %v647, %v661
    %v665 = vlaneseq
    %v666 = vshrl.u32 %v665, 7
    %v667 = vsub.s32 0, %v666
    %v668 = vrot.slane %v636, %v667
    %v670 = vmul.f32 %v662, %v668
    %v671 = vmul.f32 %v663, %v668
    %v673 = vlaneseq
    %v674 = vshrl.u32 %v673, 7
    %v675 = vsub.s32 0, %v674
    %v676 = vrot.slane %v637, %v675
    %v678 = vadd.f32 %v670, %v676
    %v679 = vadd.f32 %v671, %v676
    %s680 = scalar_lea.vmem %s3, 128
    %v681 = vld [vmem:[%s680] sm:$0xff]
    %v682 = vld [vmem:[%s680 + $0x8] sm:$0xff]
    %v683 = vld [vmem:[%s680 + $0x10] sm:$0xff]
    %v684 = vld [vmem:[%s680 + $0x18] sm:$0xff]
    %v685 = vld [vmem:[%s680 + $0x20] sm:$0xff]
    %v686 = vld [vmem:[%s680 + $0x28] sm:$0xff]
    %v687 = vld [vmem:[%s680 + $0x30] sm:$0xff]
    %v688 = vld [vmem:[%s680 + $0x38] sm:$0xff]
    %v689 = vld [vmem:[%s680 + $0x40] sm:$0xff]
    %v690 = vld [vmem:[%s680 + $0x48] sm:$0xff]
    %v691 = vld [vmem:[%s680 + $0x50] sm:$0xff]
    %v692 = vld [vmem:[%s680 + $0x58] sm:$0xff]
    %v693 = vld [vmem:[%s680 + $0x60] sm:$0xff]
    %v694 = vld [vmem:[%s680 + $0x68] sm:$0xff]
    %v695 = vld [vmem:[%s680 + $0x70] sm:$0xff]
    %v696 = vld [vmem:[%s680 + $0x78] sm:$0xff]
    %v697 = vpack.c.bf16 %v679, %v678
    %v698 = vpack.c.bf16 %v683, %v681
    %v699 = vpack.c.bf16 %v684, %v682
    %v700 = vpack.c.bf16 %v687, %v685
    %v701 = vpack.c.bf16 %v688, %v686
    %v702 = vpack.c.bf16 %v691, %v689
    %v703 = vpack.c.bf16 %v692, %v690
    %v704 = vpack.c.bf16 %v695, %v693
    %v705 = vpack.c.bf16 %v696, %v694
    %s706 = scalar_lea.vmem %s4, 2
    %v707 = vld [vmem:[%s706] sm:$0x3]
    %v709 = vlaneseq
    %v710 = vshrl.u32 %v709, 7
    %v711 = vsub.s32 0, %v710
    %v712 = vrot.slane %v707, %v711
    %v713 = vlaneseq
    %v714 = vshrl.u32 %v713, 7
    %v715 = vsub.s32 1, %v714
    %v716 = vrot.slane %v707, %v715
    %v720 = vsel %vm183, %v697, 0
    %722 = vmatprep.subr.bf16.mxu0 %v699
    %723 = vmatpush1.bf16.msra.mxu0 %v698
    %724 = vmatprep.subr.bf16.mxu0 %v701
    %725 = vmatpush1.bf16.msra.mxu0 %v700
    %726 = vmatprep.subr.bf16.mxu0 %v703
    %727 = vmatpush1.bf16.msra.mxu0 %v702
    %728 = vmatprep.subr.bf16.mxu0 %v705
    %729 = vmatpush1.bf16.msra.mxu0 %v704
    %730 = vmatprep.subr.bf16.mxu0 0
    %731 = vmatpush1.bf16.msra.mxu0 0
    %732 = vmatprep.subr.bf16.mxu0 0
    %733 = vmatpush1.bf16.msra.mxu0 0
    %734 = vmatprep.subr.bf16.mxu0 0
    %735 = vmatpush1.bf16.msra.mxu0 0
    %736 = vmatprep.subr.bf16.mxu0 0
    %737 = vmatpush1.bf16.msra.mxu0 0
    %738 = vmatprep.subr.bf16.mxu0 0
    %739 = vmatpush1.bf16.msra.mxu0 0
    %740 = vmatprep.subr.bf16.mxu0 0
    %741 = vmatpush1.bf16.msra.mxu0 0
    %742 = vmatprep.subr.bf16.mxu0 0
    %743 = vmatpush1.bf16.msra.mxu0 0
    %744 = vmatprep.subr.bf16.mxu0 0
    %745 = vmatpush1.bf16.msra.mxu0 0
    %746 = vmatprep.subr.bf16.mxu0 0
    %747 = vmatpush1.bf16.msra.mxu0 0
    %748 = vmatprep.subr.bf16.mxu0 0
    %749 = vmatpush1.bf16.msra.mxu0 0
    %750 = vmatprep.subr.bf16.mxu0 0
    %751 = vmatpush1.bf16.msra.mxu0 0
    %752 = vmatprep.subr.bf16.mxu0 0
    %753 = vmatpush1.bf16.msra.mxu0 0
    %754 = vmatprep.mubr.bf16.mxu0 0
    %755 = vmatmul.mubr.bf16.gmra.mrb[0].mxu0 %v720
    %v756 = vpop.f32.mrb[0].mxu0
    %v757 = vadd.f32 %v712, %v756
    %v758 = vpop.f32.mrb[0].mxu0
    %v759 = vadd.f32 %v716, %v758
    %v760 = vpop.f32.mrb[0].mxu0
    %v761 = vadd.f32 %v712, %v760
    %v762 = vpop.f32.mrb[0].mxu0
    %v763 = vadd.f32 %v716, %v762
    %764 = vdwg.mxu0
    %767 = vrot.lane.b32.xlu0 %v757, 64
    %v768 = vpop.permute.xlu0 %767
    %769 = vrot.lane.b32.xlu0 %v761, 64
    %v770 = vpop.permute.xlu0 %769
    %v773 = vmul.f32 %v757, %v768
    %v774 = vmul.f32 %v761, %v770
    %v775 = vmul.f32 %v757, %v770
    %v776 = vmul.f32 %v761, %v768
    %v777 = vpack.c.bf16 %v774, %v773
    %v778 = vpack.c.bf16 %v776, %v775
    %v780 = vsel %vm183, %v777, 0
    %v783 = vsel %vm183, %v778, 0
    %785 = vmatprep.subr.bf16.mxu0 0
    %786 = vmatpush1.bf16.msra.mxu0 %v244
    %787 = vmatprep.subr.bf16.mxu0 0
    %788 = vmatpush1.bf16.msra.mxu0 %v245
    %789 = vmatprep.subr.bf16.mxu0 0
    %790 = vmatpush1.bf16.msra.mxu0 %v246
    %791 = vmatprep.subr.bf16.mxu0 0
    %792 = vmatpush1.bf16.msra.mxu0 %v247
    %793 = vmatprep.subr.bf16.mxu0 0
    %794 = vmatpush1.bf16.msra.mxu0 0
    %795 = vmatprep.subr.bf16.mxu0 0
    %796 = vmatpush1.bf16.msra.mxu0 0
    %797 = vmatprep.subr.bf16.mxu0 0
    %798 = vmatpush1.bf16.msra.mxu0 0
    %799 = vmatprep.subr.bf16.mxu0 0
    %800 = vmatpush1.bf16.msra.mxu0 0
    %801 = vmatprep.subr.bf16.mxu0 0
    %802 = vmatpush1.bf16.msra.mxu0 0
    %803 = vmatprep.subr.bf16.mxu0 0
    %804 = vmatpush1.bf16.msra.mxu0 0
    %805 = vmatprep.subr.bf16.mxu0 0
    %806 = vmatpush1.bf16.msra.mxu0 0
    %807 = vmatprep.subr.bf16.mxu0 0
    %808 = vmatpush1.bf16.msra.mxu0 0
    %809 = vmatprep.subr.bf16.mxu0 0
    %810 = vmatpush1.bf16.msra.mxu0 0
    %811 = vmatprep.subr.bf16.mxu0 0
    %812 = vmatpush1.bf16.msra.mxu0 0
    %813 = vmatprep.subr.bf16.mxu0 0
    %814 = vmatpush1.bf16.msra.mxu0 0
    %815 = vmatprep.subr.bf16.mxu0 0
    %816 = vmatpush1.bf16.msra.mxu0 0
    %817 = vmatprep.mubr.bf16.mxu0 0
    %818 = vmatmul.mubr.bf16.gmra.mrb[0].mxu0 %v780
    %v819 = vpop.f32.mrb[0].mxu0
    %v820 = vadd.f32 0.0, %v819
    %v821 = vpop.f32.mrb[0].mxu0
    %v822 = vpop.f32.mrb[0].mxu0
    %v823 = vadd.f32 0.0, %v822
    %v824 = vpop.f32.mrb[0].mxu0
    %825 = vmatprep.mubr.bf16.mxu0 0
    %826 = vmatmul.mubr.bf16.gmra.mrb[0].mxu0 %v783
    %v827 = vpop.f32.mrb[0].mxu0
    %v828 = vadd.f32 0.0, %v827
    %v829 = vpop.f32.mrb[0].mxu0
    %v830 = vpop.f32.mrb[0].mxu0
    %v831 = vadd.f32 0.0, %v830
    %v832 = vpop.f32.mrb[0].mxu0
    %833 = vdwg.mxu0
    %v834 = vsub.f32 %v828, %v820
    %v835 = vsub.f32 %v831, %v823
    %v836 = vmul.f32 %v834, 1.442695
    %v837 = vpow.pop %v836
    %v838 = vmul.f32 %v835, 1.442695
    %v839 = vpow.pop %v838
    %v840 = vadd.f32 %v837, 1.0
    %v841 = vadd.f32 %v839, 1.0
    %v842 = vrcp.pop %v840
    %v843 = vrcp.pop %v841
    %v844 = vsub.f32 1.0, %v842
    %v845 = vsub.f32 1.0, %v843
    %v846 = vpack.c.bf16 %v843, %v842
    %v847 = vpack.c.bf16 %v845, %v844
    %v849 = vsel %vm318, %v846, 0
    %v852 = vsel %vm318, %v847, 0
    %854 = vmatprep.subr.bf16.mxu0 0
    %855 = vmatpush1.bf16.msra.mxu0 %v327
    %856 = vmatprep.subr.bf16.mxu0 0
    %857 = vmatpush1.bf16.msra.mxu0 0
    %858 = vmatprep.subr.bf16.mxu0 0
    %859 = vmatpush1.bf16.msra.mxu0 0
    %860 = vmatprep.subr.bf16.mxu0 0
    %861 = vmatpush1.bf16.msra.mxu0 0
    %862 = vmatprep.subr.bf16.mxu0 0
    %863 = vmatpush1.bf16.msra.mxu0 0
    %864 = vmatprep.subr.bf16.mxu0 0
    %865 = vmatpush1.bf16.msra.mxu0 0
    %866 = vmatprep.subr.bf16.mxu0 0
    %867 = vmatpush1.bf16.msra.mxu0 0
    %868 = vmatprep.subr.bf16.mxu0 0
    %869 = vmatpush1.bf16.msra.mxu0 0
    %870 = vmatprep.subr.bf16.mxu0 0
    %871 = vmatpush1.bf16.msra.mxu0 0
    %872 = vmatprep.subr.bf16.mxu0 0
    %873 = vmatpush1.bf16.msra.mxu0 0
    %874 = vmatprep.subr.bf16.mxu0 0
    %875 = vmatpush1.bf16.msra.mxu0 0
    %876 = vmatprep.subr.bf16.mxu0 0
    %877 = vmatpush1.bf16.msra.mxu0 0
    %878 = vmatprep.subr.bf16.mxu0 0
    %879 = vmatpush1.bf16.msra.mxu0 0
    %880 = vmatprep.subr.bf16.mxu0 0
    %881 = vmatpush1.bf16.msra.mxu0 0
    %882 = vmatprep.subr.bf16.mxu0 0
    %883 = vmatpush1.bf16.msra.mxu0 0
    %884 = vmatprep.subr.bf16.mxu0 0
    %885 = vmatpush1.bf16.msra.mxu0 0
    %886 = vmatprep.mubr.bf16.mxu0 0
    %887 = vmatmul.mubr.bf16.gmra.mrb[0].mxu0 %v849
    %v888 = vpop.f32.mrb[0].mxu0
    %v889 = vadd.f32 0.0, %v888
    %v890 = vpop.f32.mrb[0].mxu0
    %v891 = vpop.f32.mrb[0].mxu0
    %v892 = vadd.f32 0.0, %v891
    %v893 = vpop.f32.mrb[0].mxu0
    %894 = vmatprep.mubr.bf16.mxu0 0
    %895 = vmatmul.mubr.bf16.gmra.mrb[0].mxu0 %v852
    %v896 = vpop.f32.mrb[0].mxu0
    %v897 = vadd.f32 0.0, %v896
    %v898 = vpop.f32.mrb[0].mxu0
    %v899 = vpop.f32.mrb[0].mxu0
    %v900 = vadd.f32 0.0, %v899
    %v901 = vpop.f32.mrb[0].mxu0
    %902 = vdwg.mxu0
    %v903 = vmul.f32 %v889, %v759
    %v904 = vmul.f32 %v892, %v763
    %v905 = vmul.f32 %v897, %v763
    %v906 = vmul.f32 %v900, %v759
    %v907 = vadd.f32 %v903, %v905
    %v908 = vadd.f32 %v904, %v906
    %s909 = scalar_lea.vmem %s5, 64
    %v910 = vld [vmem:[%s909] sm:$0xff]
    %v911 = vld [vmem:[%s909 + $0x8] sm:$0xff]
    %v912 = vld [vmem:[%s909 + $0x10] sm:$0xff]
    %v913 = vld [vmem:[%s909 + $0x18] sm:$0xff]
    %v914 = vld [vmem:[%s909 + $0x20] sm:$0xff]
    %v915 = vld [vmem:[%s909 + $0x28] sm:$0xff]
    %v916 = vld [vmem:[%s909 + $0x30] sm:$0xff]
    %v917 = vld [vmem:[%s909 + $0x38] sm:$0xff]
    %v918 = vpack.c.bf16 %v908, %v907
    %v919 = vpack.c.bf16 %v911, %v910
    %v920 = vpack.c.bf16 %v913, %v912
    %v921 = vpack.c.bf16 %v915, %v914
    %v922 = vpack.c.bf16 %v917, %v916
    %s923 = scalar_lea.vmem %s6, 1
    %v924 = vld [vmem:[%s923] sm:$0x1]
    %v926 = vlaneseq
    %v927 = vshrl.u32 %v926, 7
    %v928 = vsub.s32 0, %v927
    %v929 = vrot.slane %v924, %v928
    %v932 = vsel %vm183, %v918, 0
    %934 = vmatprep.subr.bf16.mxu0 0
    %935 = vmatpush1.bf16.msra.mxu0 %v919
    %936 = vmatprep.subr.bf16.mxu0 0
    %937 = vmatpush1.bf16.msra.mxu0 %v920
    %938 = vmatprep.subr.bf16.mxu0 0
    %939 = vmatpush1.bf16.msra.mxu0 %v921
    %940 = vmatprep.subr.bf16.mxu0 0
    %941 = vmatpush1.bf16.msra.mxu0 %v922
    %942 = vmatprep.subr.bf16.mxu0 0
    %943 = vmatpush1.bf16.msra.mxu0 0
    %944 = vmatprep.subr.bf16.mxu0 0
    %945 = vmatpush1.bf16.msra.mxu0 0
    %946 = vmatprep.subr.bf16.mxu0 0
    %947 = vmatpush1.bf16.msra.mxu0 0
    %948 = vmatprep.subr.bf16.mxu0 0
    %949 = vmatpush1.bf16.msra.mxu0 0
    %950 = vmatprep.subr.bf16.mxu0 0
    %951 = vmatpush1.bf16.msra.mxu0 0
    %952 = vmatprep.subr.bf16.mxu0 0
    %953 = vmatpush1.bf16.msra.mxu0 0
    %954 = vmatprep.subr.bf16.mxu0 0
    %955 = vmatpush1.bf16.msra.mxu0 0
    %956 = vmatprep.subr.bf16.mxu0 0
    %957 = vmatpush1.bf16.msra.mxu0 0
    %958 = vmatprep.subr.bf16.mxu0 0
    %959 = vmatpush1.bf16.msra.mxu0 0
    %960 = vmatprep.subr.bf16.mxu0 0
    %961 = vmatpush1.bf16.msra.mxu0 0
    %962 = vmatprep.subr.bf16.mxu0 0
    %963 = vmatpush1.bf16.msra.mxu0 0
    %964 = vmatprep.subr.bf16.mxu0 0
    %965 = vmatpush1.bf16.msra.mxu0 0
    %966 = vmatprep.mubr.bf16.mxu0 0
    %967 = vmatmul.mubr.bf16.gmra.mrb[0].mxu0 %v932
    %v968 = vpop.f32.mrb[0].mxu0
    %v969 = vadd.f32 %v929, %v968
    %v970 = vpop.f32.mrb[0].mxu0
    %v971 = vpop.f32.mrb[0].mxu0
    %v972 = vadd.f32 %v929, %v971
    %v973 = vpop.f32.mrb[0].mxu0
    %974 = vdwg.mxu0
    %v975 = vadd.f32 %v678, %v969
    %v976 = vadd.f32 %v679, %v972
    %s977 = scalar_lea.vmem %s7, 1
    %v978 = vld [vmem:[%s977] sm:$0x1]
    %s979 = scalar_lea.vmem %s8, 1
    %v980 = vld [vmem:[%s979] sm:$0x1]
    %v981 = vsel %vm183, %v975, 0.0
    %982 = vadd.xlane.f32.xlu0 %v981
    %v983 = vpop.xlane.xlu0 %982
    %v984 = vsel %vm183, %v976, 0.0
    %985 = vadd.xlane.f32.xlu0 %v984
    %v986 = vpop.xlane.xlu0 %985
    %v987 = vmul.f32 %v983, %v458
    %v988 = vmul.f32 %v986, %v458
    %v989 = vsub.f32 %v975, %v987
    %v990 = vsub.f32 %v976, %v988
    %v991 = vmul.f32 %v989, %v989
    %v992 = vmul.f32 %v990, %v990
    %v993 = vsel %vm183, %v991, 0.0
    %994 = vadd.xlane.f32.xlu0 %v993
    %v995 = vpop.xlane.xlu0 %994
    %v996 = vsel %vm183, %v992, 0.0
    %997 = vadd.xlane.f32.xlu0 %v996
    %v998 = vpop.xlane.xlu0 %997
    %v999 = vmul.f32 %v995, %v458
    %v1000 = vmul.f32 %v998, %v458
    %v1001 = vadd.f32 %v999, 1e-05
    %v1002 = vadd.f32 %v1000, 1e-05
    %v1003 = vrsqrt.pop %v1001
    %v1004 = vrsqrt.pop %v1002
    %v1005 = vmul.f32 %v989, %v1003
    %v1006 = vmul.f32 %v990, %v1004
    %v1008 = vlaneseq
    %v1009 = vshrl.u32 %v1008, 7
    %v1010 = vsub.s32 0, %v1009
    %v1011 = vrot.slane %v978, %v1010
    %v1013 = vmul.f32 %v1005, %v1011
    %v1014 = vmul.f32 %v1006, %v1011
    %v1016 = vlaneseq
    %v1017 = vshrl.u32 %v1016, 7
    %v1018 = vsub.s32 0, %v1017
    %v1019 = vrot.slane %v980, %v1018
    %v1021 = vadd.f32 %v1013, %v1019
    %v1022 = vadd.f32 %v1014, %v1019
    %s1023 = scalar_lea.vmem [#allocation2], 64
    %v1024 = vld [vmem:[%s1023] sm:$0xff]
    %v1025 = vld [vmem:[%s1023 + $0x8] sm:$0xff]
    %v1026 = vld [vmem:[%s1023 + $0x10] sm:$0xff]
    %v1027 = vld [vmem:[%s1023 + $0x18] sm:$0xff]
    %v1028 = vld [vmem:[%s1023 + $0x20] sm:$0xff]
    %v1029 = vld [vmem:[%s1023 + $0x28] sm:$0xff]
    %v1030 = vld [vmem:[%s1023 + $0x30] sm:$0xff]
    %v1031 = vld [vmem:[%s1023 + $0x38] sm:$0xff]
    %v1032 = vpack.c.bf16 %v1022, %v1021
    %v1033 = vpack.c.bf16 %v1025, %v1024
    %v1034 = vpack.c.bf16 %v1027, %v1026
    %v1035 = vpack.c.bf16 %v1029, %v1028
    %v1036 = vpack.c.bf16 %v1031, %v1030
    %s1037 = scalar_lea.vmem %s12, 1
    %v1038 = vld [vmem:[%s1037] sm:$0x1]
    %v1040 = vlaneseq
    %v1041 = vshrl.u32 %v1040, 7
    %v1042 = vsub.s32 0, %v1041
    %v1043 = vrot.slane %v1038, %v1042
    %v1046 = vsel %vm183, %v1032, 0
    %1048 = vmatprep.subr.bf16.mxu0 0
    %1049 = vmatpush1.bf16.msra.mxu0 %v1033
    %1050 = vmatprep.subr.bf16.mxu0 0
    %1051 = vmatpush1.bf16.msra.mxu0 %v1034
    %1052 = vmatprep.subr.bf16.mxu0 0
    %1053 = vmatpush1.bf16.msra.mxu0 %v1035
    %1054 = vmatprep.subr.bf16.mxu0 0
    %1055 = vmatpush1.bf16.msra.mxu0 %v1036
    %1056 = vmatprep.subr.bf16.mxu0 0
    %1057 = vmatpush1.bf16.msra.mxu0 0
    %1058 = vmatprep.subr.bf16.mxu0 0
    %1059 = vmatpush1.bf16.msra.mxu0 0
    %1060 = vmatprep.subr.bf16.mxu0 0
    %1061 = vmatpush1.bf16.msra.mxu0 0
    %1062 = vmatprep.subr.bf16.mxu0 0
    %1063 = vmatpush1.bf16.msra.mxu0 0
    %1064 = vmatprep.subr.bf16.mxu0 0
    %1065 = vmatpush1.bf16.msra.mxu0 0
    %1066 = vmatprep.subr.bf16.mxu0 0
    %1067 = vmatpush1.bf16.msra.mxu0 0
    %1068 = vmatprep.subr.bf16.mxu0 0
    %1069 = vmatpush1.bf16.msra.mxu0 0
    %1070 = vmatprep.subr.bf16.mxu0 0
    %1071 = vmatpush1.bf16.msra.mxu0 0
    %1072 = vmatprep.subr.bf16.mxu0 0
    %1073 = vmatpush1.bf16.msra.mxu0 0
    %1074 = vmatprep.subr.bf16.mxu0 0
    %1075 = vmatpush1.bf16.msra.mxu0 0
    %1076 = vmatprep.subr.bf16.mxu0 0
    %1077 = vmatpush1.bf16.msra.mxu0 0
    %1078 = vmatprep.subr.bf16.mxu0 0
    %1079 = vmatpush1.bf16.msra.mxu0 0
    %1080 = vmatprep.mubr.bf16.mxu0 0
    %1081 = vmatmul.mubr.bf16.gmra.mrb[0].mxu0 %v1046
    %v1082 = vpop.f32.mrb[0].mxu0
    %v1083 = vadd.f32 %v1043, %v1082
    %v1084 = vpop.f32.mrb[0].mxu0
    %v1085 = vpop.f32.mrb[0].mxu0
    %v1086 = vadd.f32 %v1043, %v1085
    %v1087 = vpop.f32.mrb[0].mxu0
    %1088 = vdwg.mxu0
    %v1089 = vmax.f32 %v1083, 0.0
    %v1090 = vmax.f32 %v1086, 0.0
    %s1091 = scalar_lea.vmem %s13, 128
    %v1092 = vld [vmem:[%s1091] sm:$0xff]
    %v1093 = vld [vmem:[%s1091 + $0x8] sm:$0xff]
    %v1094 = vld [vmem:[%s1091 + $0x10] sm:$0xff]
    %v1095 = vld [vmem:[%s1091 + $0x18] sm:$0xff]
    %v1096 = vld [vmem:[%s1091 + $0x20] sm:$0xff]
    %v1097 = vld [vmem:[%s1091 + $0x28] sm:$0xff]
    %v1098 = vld [vmem:[%s1091 + $0x30] sm:$0xff]
    %v1099 = vld [vmem:[%s1091 + $0x38] sm:$0xff]
    %v1100 = vld [vmem:[%s1091 + $0x40] sm:$0xff]
    %v1101 = vld [vmem:[%s1091 + $0x48] sm:$0xff]
    %v1102 = vld [vmem:[%s1091 + $0x50] sm:$0xff]
    %v1103 = vld [vmem:[%s1091 + $0x58] sm:$0xff]
    %v1104 = vld [vmem:[%s1091 + $0x60] sm:$0xff]
    %v1105 = vld [vmem:[%s1091 + $0x68] sm:$0xff]
    %v1106 = vld [vmem:[%s1091 + $0x70] sm:$0xff]
    %v1107 = vld [vmem:[%s1091 + $0x78] sm:$0xff]
    %v1108 = vpack.c.bf16 %v1090, %v1089
    %v1109 = vpack.c.bf16 %v1093, %v1092
    %v1110 = vpack.c.bf16 %v1095, %v1094
    %v1111 = vpack.c.bf16 %v1097, %v1096
    %v1112 = vpack.c.bf16 %v1099, %v1098
    %v1113 = vpack.c.bf16 %v1101, %v1100
    %v1114 = vpack.c.bf16 %v1103, %v1102
    %v1115 = vpack.c.bf16 %v1105, %v1104
    %v1116 = vpack.c.bf16 %v1107, %v1106
    %s1117 = scalar_lea.vmem %s14, 1
    %v1118 = vld [vmem:[%s1117] sm:$0x1]
    %v1120 = vlaneseq
    %v1121 = vshrl.u32 %v1120, 7
    %v1122 = vsub.s32 0, %v1121
    %v1123 = vrot.slane %v1118, %v1122
    %1125 = vmatprep.subr.bf16.mxu0 0
    %1126 = vmatpush1.bf16.msra.mxu0 %v1109
    %1127 = vmatprep.subr.bf16.mxu0 0
    %1128 = vmatpush1.bf16.msra.mxu0 %v1110
    %1129 = vmatprep.subr.bf16.mxu0 0
    %1130 = vmatpush1.bf16.msra.mxu0 %v1111
    %1131 = vmatprep.subr.bf16.mxu0 0
    %1132 = vmatpush1.bf16.msra.mxu0 %v1112
    %1133 = vmatprep.subr.bf16.mxu0 0
    %1134 = vmatpush1.bf16.msra.mxu0 %v1113
    %1135 = vmatprep.subr.bf16.mxu0 0
    %1136 = vmatpush1.bf16.msra.mxu0 %v1114
    %1137 = vmatprep.subr.bf16.mxu0 0
    %1138 = vmatpush1.bf16.msra.mxu0 %v1115
    %1139 = vmatprep.subr.bf16.mxu0 0
    %1140 = vmatpush1.bf16.msra.mxu0 %v1116
    %1141 = vmatprep.subr.bf16.mxu0 0
    %1142 = vmatpush1.bf16.msra.mxu0 0
    %1143 = vmatprep.subr.bf16.mxu0 0
    %1144 = vmatpush1.bf16.msra.mxu0 0
    %1145 = vmatprep.subr.bf16.mxu0 0
    %1146 = vmatpush1.bf16.msra.mxu0 0
    %1147 = vmatprep.subr.bf16.mxu0 0
    %1148 = vmatpush1.bf16.msra.mxu0 0
    %1149 = vmatprep.subr.bf16.mxu0 0
    %1150 = vmatpush1.bf16.msra.mxu0 0
    %1151 = vmatprep.subr.bf16.mxu0 0
    %1152 = vmatpush1.bf16.msra.mxu0 0
    %1153 = vmatprep.subr.bf16.mxu0 0
    %1154 = vmatpush1.bf16.msra.mxu0 0
    %1155 = vmatprep.subr.bf16.mxu0 0
    %1156 = vmatpush1.bf16.msra.mxu0 0
    %1157 = vmatprep.mubr.bf16.mxu0 0
    %1158 = vmatmul.mubr.bf16.gmra.mrb[0].mxu0 %v1108
    %v1159 = vpop.f32.mrb[0].mxu0
    %v1160 = vadd.f32 %v1123, %v1159
    %v1161 = vpop.f32.mrb[0].mxu0
    %v1162 = vpop.f32.mrb[0].mxu0
    %v1163 = vadd.f32 %v1123, %v1162
    %v1164 = vpop.f32.mrb[0].mxu0
    %1165 = vdwg.mxu0
    %v1166 = vadd.f32 %v1021, %v1160
    %v1167 = vadd.f32 %v1022, %v1163
    %s1168 = scalar_lea.vmem %s9, 1
    %v1169 = vld [vmem:[%s1168] sm:$0x1]
    %s1170 = scalar_lea.vmem %s10, 1
    %v1171 = vld [vmem:[%s1170] sm:$0x1]
    %v1172 = vsel %vm183, %v1166, 0.0
    %1173 = vadd.xlane.f32.xlu0 %v1172
    %v1174 = vpop.xlane.xlu0 %1173
    %v1175 = vsel %vm183, %v1167, 0.0
    %1176 = vadd.xlane.f32.xlu0 %v1175
    %v1177 = vpop.xlane.xlu0 %1176
    %v1178 = vmul.f32 %v1174, %v458
    %v1179 = vmul.f32 %v1177, %v458
    %v1180 = vsub.f32 %v1166, %v1178
    %v1181 = vsub.f32 %v1167, %v1179
    %v1182 = vmul.f32 %v1180, %v1180
    %v1183 = vmul.f32 %v1181, %v1181
    %v1184 = vsel %vm183, %v1182, 0.0
    %1185 = vadd.xlane.f32.xlu0 %v1184
    %v1186 = vpop.xlane.xlu0 %1185
    %v1187 = vsel %vm183, %v1183, 0.0
    %1188 = vadd.xlane.f32.xlu0 %v1187
    %v1189 = vpop.xlane.xlu0 %1188
    %v1190 = vmul.f32 %v1186, %v458
    %v1191 = vmul.f32 %v1189, %v458
    %v1192 = vadd.f32 %v1190, 1e-05
    %v1193 = vadd.f32 %v1191, 1e-05
    %v1194 = vrsqrt.pop %v1192
    %v1195 = vrsqrt.pop %v1193
    %v1196 = vmul.f32 %v1180, %v1194
    %v1197 = vmul.f32 %v1181, %v1195
    %v1199 = vlaneseq
    %v1200 = vshrl.u32 %v1199, 7
    %v1201 = vsub.s32 0, %v1200
    %v1202 = vrot.slane %v1169, %v1201
    %v1204 = vmul.f32 %v1196, %v1202
    %v1205 = vmul.f32 %v1197, %v1202
    %v1207 = vlaneseq
    %v1208 = vshrl.u32 %v1207, 7
    %v1209 = vsub.s32 0, %v1208
    %v1210 = vrot.slane %v1171, %v1209
    %v1212 = vadd.f32 %v1204, %v1210
    %v1213 = vadd.f32 %v1205, %v1210
    %s1214 = scalar_lea.vmem %s3, 256
    %v1215 = vld [vmem:[%s1214] sm:$0xff]
    %v1216 = vld [vmem:[%s1214 + $0x8] sm:$0xff]
    %v1217 = vld [vmem:[%s1214 + $0x10] sm:$0xff]
    %v1218 = vld [vmem:[%s1214 + $0x18] sm:$0xff]
    %v1219 = vld [vmem:[%s1214 + $0x20] sm:$0xff]
    %v1220 = vld [vmem:[%s1214 + $0x28] sm:$0xff]
    %v1221 = vld [vmem:[%s1214 + $0x30] sm:$0xff]
    %v1222 = vld [vmem:[%s1214 + $0x38] sm:$0xff]
    %v1223 = vld [vmem:[%s1214 + $0x40] sm:$0xff]
    %v1224 = vld [vmem:[%s1214 + $0x48] sm:$0xff]
    %v1225 = vld [vmem:[%s1214 + $0x50] sm:$0xff]
    %v1226 = vld [vmem:[%s1214 + $0x58] sm:$0xff]
    %v1227 = vld [vmem:[%s1214 + $0x60] sm:$0xff]
    %v1228 = vld [vmem:[%s1214 + $0x68] sm:$0xff]
    %v1229 = vld [vmem:[%s1214 + $0x70] sm:$0xff]
    %v1230 = vld [vmem:[%s1214 + $0x78] sm:$0xff]
    %v1231 = vpack.c.bf16 %v1213, %v1212
    %v1232 = vpack.c.bf16 %v1217, %v1215
    %v1233 = vpack.c.bf16 %v1218, %v1216
    %v1234 = vpack.c.bf16 %v1221, %v1219
    %v1235 = vpack.c.bf16 %v1222, %v1220
    %v1236 = vpack.c.bf16 %v1225, %v1223
    %v1237 = vpack.c.bf16 %v1226, %v1224
    %v1238 = vpack.c.bf16 %v1229, %v1227
    %v1239 = vpack.c.bf16 %v1230, %v1228
    %s1240 = scalar_lea.vmem %s4, 4
    %v1241 = vld [vmem:[%s1240] sm:$0x3]
    %v1243 = vlaneseq
    %v1244 = vshrl.u32 %v1243, 7
    %v1245 = vsub.s32 0, %v1244
    %v1246 = vrot.slane %v1241, %v1245
    %v1247 = vlaneseq
    %v1248 = vshrl.u32 %v1247, 7
    %v1249 = vsub.s32 1, %v1248
    %v1250 = vrot.slane %v1241, %v1249
    %v1254 = vsel %vm183, %v1231, 0
    %1256 = vmatprep.subr.bf16.mxu0 %v1233
    %1257 = vmatpush1.bf16.msra.mxu0 %v1232
    %1258 = vmatprep.subr.bf16.mxu0 %v1235
    %1259 = vmatpush1.bf16.msra.mxu0 %v1234
    %1260 = vmatprep.subr.bf16.mxu0 %v1237
    %1261 = vmatpush1.bf16.msra.mxu0 %v1236
    %1262 = vmatprep.subr.bf16.mxu0 %v1239
    %1263 = vmatpush1.bf16.msra.mxu0 %v1238
    %1264 = vmatprep.subr.bf16.mxu0 0
    %1265 = vmatpush1.bf16.msra.mxu0 0
    %1266 = vmatprep.subr.bf16.mxu0 0
    %1267 = vmatpush1.bf16.msra.mxu0 0
    %1268 = vmatprep.subr.bf16.mxu0 0
    %1269 = vmatpush1.bf16.msra.mxu0 0
    %1270 = vmatprep.subr.bf16.mxu0 0
    %1271 = vmatpush1.bf16.msra.mxu0 0
    %1272 = vmatprep.subr.bf16.mxu0 0
    %1273 = vmatpush1.bf16.msra.mxu0 0
    %1274 = vmatprep.subr.bf16.mxu0 0
    %1275 = vmatpush1.bf16.msra.mxu0 0
    %1276 = vmatprep.subr.bf16.mxu0 0
    %1277 = vmatpush1.bf16.msra.mxu0 0
    %1278 = vmatprep.subr.bf16.mxu0 0
    %1279 = vmatpush1.bf16.msra.mxu0 0
    %1280 = vmatprep.subr.bf16.mxu0 0
    %1281 = vmatpush1.bf16.msra.mxu0 0
    %1282 = vmatprep.subr.bf16.mxu0 0
    %1283 = vmatpush1.bf16.msra.mxu0 0
    %1284 = vmatprep.subr.bf16.mxu0 0
    %1285 = vmatpush1.bf16.msra.mxu0 0
    %1286 = vmatprep.subr.bf16.mxu0 0
    %1287 = vmatpush1.bf16.msra.mxu0 0
    %1288 = vmatprep.mubr.bf16.mxu0 0
    %1289 = vmatmul.mubr.bf16.gmra.mrb[0].mxu0 %v1254
    %v1290 = vpop.f32.mrb[0].mxu0
    %v1291 = vadd.f32 %v1246, %v1290
    %v1292 = vpop.f32.mrb[0].mxu0
    %v1293 = vadd.f32 %v1250, %v1292
    %v1294 = vpop.f32.mrb[0].mxu0
    %v1295 = vadd.f32 %v1246, %v1294
    %v1296 = vpop.f32.mrb[0].mxu0
    %v1297 = vadd.f32 %v1250, %v1296
    %1298 = vdwg.mxu0
    %1301 = vrot.lane.b32.xlu0 %v1291, 64
    %v1302 = vpop.permute.xlu0 %1301
    %1303 = vrot.lane.b32.xlu0 %v1295, 64
    %v1304 = vpop.permute.xlu0 %1303
    %v1307 = vmul.f32 %v1291, %v1302
    %v1308 = vmul.f32 %v1295, %v1304
    %v1309 = vmul.f32 %v1291, %v1304
    %v1310 = vmul.f32 %v1295, %v1302
    %v1311 = vpack.c.bf16 %v1308, %v1307
    %v1312 = vpack.c.bf16 %v1310, %v1309
    %v1314 = vsel %vm183, %v1311, 0
    %v1317 = vsel %vm183, %v1312, 0
    %1319 = vmatprep.subr.bf16.mxu0 0
    %1320 = vmatpush1.bf16.msra.mxu0 %v244
    %1321 = vmatprep.subr.bf16.mxu0 0
    %1322 = vmatpush1.bf16.msra.mxu0 %v245
    %1323 = vmatprep.subr.bf16.mxu0 0
    %1324 = vmatpush1.bf16.msra.mxu0 %v246
    %1325 = vmatprep.subr.bf16.mxu0 0
    %1326 = vmatpush1.bf16.msra.mxu0 %v247
    %1327 = vmatprep.subr.bf16.mxu0 0
    %1328 = vmatpush1.bf16.msra.mxu0 0
    %1329 = vmatprep.subr.bf16.mxu0 0
    %1330 = vmatpush1.bf16.msra.mxu0 0
    %1331 = vmatprep.subr.bf16.mxu0 0
    %1332 = vmatpush1.bf16.msra.mxu0 0
    %1333 = vmatprep.subr.bf16.mxu0 0
    %1334 = vmatpush1.bf16.msra.mxu0 0
    %1335 = vmatprep.subr.bf16.mxu0 0
    %1336 = vmatpush1.bf16.msra.mxu0 0
    %1337 = vmatprep.subr.bf16.mxu0 0
    %1338 = vmatpush1.bf16.msra.mxu0 0
    %1339 = vmatprep.subr.bf16.mxu0 0
    %1340 = vmatpush1.bf16.msra.mxu0 0
    %1341 = vmatprep.subr.bf16.mxu0 0
    %1342 = vmatpush1.bf16.msra.mxu0 0
    %1343 = vmatprep.subr.bf16.mxu0 0
    %1344 = vmatpush1.bf16.msra.mxu0 0
    %1345 = vmatprep.subr.bf16.mxu0 0
    %1346 = vmatpush1.bf16.msra.mxu0 0
    %1347 = vmatprep.subr.bf16.mxu0 0
    %1348 = vmatpush1.bf16.msra.mxu0 0
    %1349 = vmatprep.subr.bf16.mxu0 0
    %1350 = vmatpush1.bf16.msra.mxu0 0
    %1351 = vmatprep.mubr.bf16.mxu0 0
    %1352 = vmatmul.mubr.bf16.gmra.mrb[0].mxu0 %v1314
    %v1353 = vpop.f32.mrb[0].mxu0
    %v1354 = vadd.f32 0.0, %v1353
    %v1355 = vpop.f32.mrb[0].mxu0
    %v1356 = vpop.f32.mrb[0].mxu0
    %v1357 = vadd.f32 0.0, %v1356
    %v1358 = vpop.f32.mrb[0].mxu0
    %1359 = vmatprep.mubr.bf16.mxu0 0
    %1360 = vmatmul.mubr.bf16.gmra.mrb[0].mxu0 %v1317
    %v1361 = vpop.f32.mrb[0].mxu0
    %v1362 = vadd.f32 0.0, %v1361
    %v1363 = vpop.f32.mrb[0].mxu0
    %v1364 = vpop.f32.mrb[0].mxu0
    %v1365 = vadd.f32 0.0, %v1364
    %v1366 = vpop.f32.mrb[0].mxu0
    %1367 = vdwg.mxu0
    %v1368 = vsub.f32 %v1362, %v1354
    %v1369 = vsub.f32 %v1365, %v1357
    %v1370 = vmul.f32 %v1368, 1.442695
    %v1371 = vpow.pop %v1370
    %v1372 = vmul.f32 %v1369, 1.442695
    %v1373 = vpow.pop %v1372
    %v1374 = vadd.f32 %v1371, 1.0
    %v1375 = vadd.f32 %v1373, 1.0
    %v1376 = vrcp.pop %v1374
    %v1377 = vrcp.pop %v1375
    %v1378 = vsub.f32 1.0, %v1376
    %v1379 = vsub.f32 1.0, %v1377
    %v1380 = vpack.c.bf16 %v1377, %v1376
    %v1381 = vpack.c.bf16 %v1379, %v1378
    %v1383 = vsel %vm318, %v1380, 0
    %v1386 = vsel %vm318, %v1381, 0
    %1388 = vmatprep.subr.bf16.mxu0 0
    %1389 = vmatpush1.bf16.msra.mxu0 %v327
    %1390 = vmatprep.subr.bf16.mxu0 0
    %1391 = vmatpush1.bf16.msra.mxu0 0
    %1392 = vmatprep.subr.bf16.mxu0 0
    %1393 = vmatpush1.bf16.msra.mxu0 0
    %1394 = vmatprep.subr.bf16.mxu0 0
    %1395 = vmatpush1.bf16.msra.mxu0 0
    %1396 = vmatprep.subr.bf16.mxu0 0
    %1397 = vmatpush1.bf16.msra.mxu0 0
    %1398 = vmatprep.subr.bf16.mxu0 0
    %1399 = vmatpush1.bf16.msra.mxu0 0
    %1400 = vmatprep.subr.bf16.mxu0 0
    %1401 = vmatpush1.bf16.msra.mxu0 0
    %1402 = vmatprep.subr.bf16.mxu0 0
    %1403 = vmatpush1.bf16.msra.mxu0 0
    %1404 = vmatprep.subr.bf16.mxu0 0
    %1405 = vmatpush1.bf16.msra.mxu0 0
    %1406 = vmatprep.subr.bf16.mxu0 0
    %1407 = vmatpush1.bf16.msra.mxu0 0
    %1408 = vmatprep.subr.bf16.mxu0 0
    %1409 = vmatpush1.bf16.msra.mxu0 0
    %1410 = vmatprep.subr.bf16.mxu0 0
    %1411 = vmatpush1.bf16.msra.mxu0 0
    %1412 = vmatprep.subr.bf16.mxu0 0
    %1413 = vmatpush1.bf16.msra.mxu0 0
    %1414 = vmatprep.subr.bf16.mxu0 0
    %1415 = vmatpush1.bf16.msra.mxu0 0
    %1416 = vmatprep.subr.bf16.mxu0 0
    %1417 = vmatpush1.bf16.msra.mxu0 0
    %1418 = vmatprep.subr.bf16.mxu0 0
    %1419 = vmatpush1.bf16.msra.mxu0 0
    %1420 = vmatprep.mubr.bf16.mxu0 0
    %1421 = vmatmul.mubr.bf16.gmra.mrb[0].mxu0 %v1383
    %v1422 = vpop.f32.mrb[0].mxu0
    %v1423 = vadd.f32 0.0, %v1422
    %v1424 = vpop.f32.mrb[0].mxu0
    %v1425 = vpop.f32.mrb[0].mxu0
    %v1426 = vadd.f32 0.0, %v1425
    %v1427 = vpop.f32.mrb[0].mxu0
    %1428 = vmatprep.mubr.bf16.mxu0 0
    %1429 = vmatmul.mubr.bf16.gmra.mrb[0].mxu0 %v1386
    %v1430 = vpop.f32.mrb[0].mxu0
    %v1431 = vadd.f32 0.0, %v1430
    %v1432 = vpop.f32.mrb[0].mxu0
    %v1433 = vpop.f32.mrb[0].mxu0
    %v1434 = vadd.f32 0.0, %v1433
    %v1435 = vpop.f32.mrb[0].mxu0
    %1436 = vdwg.mxu0
    %v1437 = vmul.f32 %v1423, %v1293
    %v1438 = vmul.f32 %v1426, %v1297
    %v1439 = vmul.f32 %v1431, %v1297
    %v1440 = vmul.f32 %v1434, %v1293
    %v1441 = vadd.f32 %v1437, %v1439
    %v1442 = vadd.f32 %v1438, %v1440
    %s1443 = scalar_lea.vmem %s5, 128
    %v1444 = vld [vmem:[%s1443] sm:$0xff]
    %v1445 = vld [vmem:[%s1443 + $0x8] sm:$0xff]
    %v1446 = vld [vmem:[%s1443 + $0x10] sm:$0xff]
    %v1447 = vld [vmem:[%s1443 + $0x18] sm:$0xff]
    %v1448 = vld [vmem:[%s1443 + $0x20] sm:$0xff]
    %v1449 = vld [vmem:[%s1443 + $0x28] sm:$0xff]
    %v1450 = vld [vmem:[%s1443 + $0x30] sm:$0xff]
    %v1451 = vld [vmem:[%s1443 + $0x38] sm:$0xff]
    %v1452 = vpack.c.bf16 %v1442, %v1441
    %v1453 = vpack.c.bf16 %v1445, %v1444
    %v1454 = vpack.c.bf16 %v1447, %v1446
    %v1455 = vpack.c.bf16 %v1449, %v1448
    %v1456 = vpack.c.bf16 %v1451, %v1450
    %s1457 = scalar_lea.vmem %s6, 2
    %v1458 = vld [vmem:[%s1457] sm:$0x1]
    %v1460 = vlaneseq
    %v1461 = vshrl.u32 %v1460, 7
    %v1462 = vsub.s32 0, %v1461
    %v1463 = vrot.slane %v1458, %v1462
    %v1466 = vsel %vm183, %v1452, 0
    %1468 = vmatprep.subr.bf16.mxu0 0
    %1469 = vmatpush1.bf16.msra.mxu0 %v1453
    %1470 = vmatprep.subr.bf16.mxu0 0
    %1471 = vmatpush1.bf16.msra.mxu0 %v1454
    %1472 = vmatprep.subr.bf16.mxu0 0
    %1473 = vmatpush1.bf16.msra.mxu0 %v1455
    %1474 = vmatprep.subr.bf16.mxu0 0
    %1475 = vmatpush1.bf16.msra.mxu0 %v1456
    %1476 = vmatprep.subr.bf16.mxu0 0
    %1477 = vmatpush1.bf16.msra.mxu0 0
    %1478 = vmatprep.subr.bf16.mxu0 0
    %1479 = vmatpush1.bf16.msra.mxu0 0
    %1480 = vmatprep.subr.bf16.mxu0 0
    %1481 = vmatpush1.bf16.msra.mxu0 0
    %1482 = vmatprep.subr.bf16.mxu0 0
    %1483 = vmatpush1.bf16.msra.mxu0 0
    %1484 = vmatprep.subr.bf16.mxu0 0
    %1485 = vmatpush1.bf16.msra.mxu0 0
    %1486 = vmatprep.subr.bf16.mxu0 0
    %1487 = vmatpush1.bf16.msra.mxu0 0
    %1488 = vmatprep.subr.bf16.mxu0 0
    %1489 = vmatpush1.bf16.msra.mxu0 0
    %1490 = vmatprep.subr.bf16.mxu0 0
    %1491 = vmatpush1.bf16.msra.mxu0 0
    %1492 = vmatprep.subr.bf16.mxu0 0
    %1493 = vmatpush1.bf16.msra.mxu0 0
    %1494 = vmatprep.subr.bf16.mxu0 0
    %1495 = vmatpush1.bf16.msra.mxu0 0
    %1496 = vmatprep.subr.bf16.mxu0 0
    %1497 = vmatpush1.bf16.msra.mxu0 0
    %1498 = vmatprep.subr.bf16.mxu0 0
    %1499 = vmatpush1.bf16.msra.mxu0 0
    %1500 = vmatprep.mubr.bf16.mxu0 0
    %1501 = vmatmul.mubr.bf16.gmra.mrb[0].mxu0 %v1466
    %v1502 = vpop.f32.mrb[0].mxu0
    %v1503 = vadd.f32 %v1463, %v1502
    %v1504 = vpop.f32.mrb[0].mxu0
    %v1505 = vpop.f32.mrb[0].mxu0
    %v1506 = vadd.f32 %v1463, %v1505
    %v1507 = vpop.f32.mrb[0].mxu0
    %1508 = vdwg.mxu0
    %v1509 = vadd.f32 %v1212, %v1503
    %v1510 = vadd.f32 %v1213, %v1506
    %s1511 = scalar_lea.vmem %s7, 2
    %v1512 = vld [vmem:[%s1511] sm:$0x1]
    %s1513 = scalar_lea.vmem %s8, 2
    %v1514 = vld [vmem:[%s1513] sm:$0x1]
    %v1515 = vsel %vm183, %v1509, 0.0
    %1516 = vadd.xlane.f32.xlu0 %v1515
    %v1517 = vpop.xlane.xlu0 %1516
    %v1518 = vsel %vm183, %v1510, 0.0
    %1519 = vadd.xlane.f32.xlu0 %v1518
    %v1520 = vpop.xlane.xlu0 %1519
    %v1521 = vmul.f32 %v1517, %v458
    %v1522 = vmul.f32 %v1520, %v458
    %v1523 = vsub.f32 %v1509, %v1521
    %v1524 = vsub.f32 %v1510, %v1522
    %v1525 = vmul.f32 %v1523, %v1523
    %v1526 = vmul.f32 %v1524, %v1524
    %v1527 = vsel %vm183, %v1525, 0.0
    %1528 = vadd.xlane.f32.xlu0 %v1527
    %v1529 = vpop.xlane.xlu0 %1528
    %v1530 = vsel %vm183, %v1526, 0.0
    %1531 = vadd.xlane.f32.xlu0 %v1530
    %v1532 = vpop.xlane.xlu0 %1531
    %v1533 = vmul.f32 %v1529, %v458
    %v1534 = vmul.f32 %v1532, %v458
    %v1535 = vadd.f32 %v1533, 1e-05
    %v1536 = vadd.f32 %v1534, 1e-05
    %v1537 = vrsqrt.pop %v1535
    %v1538 = vrsqrt.pop %v1536
    %v1539 = vmul.f32 %v1523, %v1537
    %v1540 = vmul.f32 %v1524, %v1538
    %v1542 = vlaneseq
    %v1543 = vshrl.u32 %v1542, 7
    %v1544 = vsub.s32 0, %v1543
    %v1545 = vrot.slane %v1512, %v1544
    %v1547 = vmul.f32 %v1539, %v1545
    %v1548 = vmul.f32 %v1540, %v1545
    %v1550 = vlaneseq
    %v1551 = vshrl.u32 %v1550, 7
    %v1552 = vsub.s32 0, %v1551
    %v1553 = vrot.slane %v1514, %v1552
    %v1555 = vadd.f32 %v1547, %v1553
    %v1556 = vadd.f32 %v1548, %v1553
    %s1557 = scalar_lea.vmem [#allocation2], 128
    %v1558 = vld [vmem:[%s1557] sm:$0xff]
    %v1559 = vld [vmem:[%s1557 + $0x8] sm:$0xff]
    %v1560 = vld [vmem:[%s1557 + $0x10] sm:$0xff]
    %v1561 = vld [vmem:[%s1557 + $0x18] sm:$0xff]
    %v1562 = vld [vmem:[%s1557 + $0x20] sm:$0xff]
    %v1563 = vld [vmem:[%s1557 + $0x28] sm:$0xff]
    %v1564 = vld [vmem:[%s1557 + $0x30] sm:$0xff]
    %v1565 = vld [vmem:[%s1557 + $0x38] sm:$0xff]
    %v1566 = vpack.c.bf16 %v1556, %v1555
    %v1567 = vpack.c.bf16 %v1559, %v1558
    %v1568 = vpack.c.bf16 %v1561, %v1560
    %v1569 = vpack.c.bf16 %v1563, %v1562
    %v1570 = vpack.c.bf16 %v1565, %v1564
    %s1571 = scalar_lea.vmem %s12, 2
    %v1572 = vld [vmem:[%s1571] sm:$0x1]
    %v1574 = vlaneseq
    %v1575 = vshrl.u32 %v1574, 7
    %v1576 = vsub.s32 0, %v1575
    %v1577 = vrot.slane %v1572, %v1576
    %v1580 = vsel %vm183, %v1566, 0
    %1582 = vmatprep.subr.bf16.mxu0 0
    %1583 = vmatpush1.bf16.msra.mxu0 %v1567
    %1584 = vmatprep.subr.bf16.mxu0 0
    %1585 = vmatpush1.bf16.msra.mxu0 %v1568
    %1586 = vmatprep.subr.bf16.mxu0 0
    %1587 = vmatpush1.bf16.msra.mxu0 %v1569
    %1588 = vmatprep.subr.bf16.mxu0 0
    %1589 = vmatpush1.bf16.msra.mxu0 %v1570
    %1590 = vmatprep.subr.bf16.mxu0 0
    %1591 = vmatpush1.bf16.msra.mxu0 0
    %1592 = vmatprep.subr.bf16.mxu0 0
    %1593 = vmatpush1.bf16.msra.mxu0 0
    %1594 = vmatprep.subr.bf16.mxu0 0
    %1595 = vmatpush1.bf16.msra.mxu0 0
    %1596 = vmatprep.subr.bf16.mxu0 0
    %1597 = vmatpush1.bf16.msra.mxu0 0
    %1598 = vmatprep.subr.bf16.mxu0 0
    %1599 = vmatpush1.bf16.msra.mxu0 0
    %1600 = vmatprep.subr.bf16.mxu0 0
    %1601 = vmatpush1.bf16.msra.mxu0 0
    %1602 = vmatprep.subr.bf16.mxu0 0
    %1603 = vmatpush1.bf16.msra.mxu0 0
    %1604 = vmatprep.subr.bf16.mxu0 0
    %1605 = vmatpush1.bf16.msra.mxu0 0
    %1606 = vmatprep.subr.bf16.mxu0 0
    %1607 = vmatpush1.bf16.msra.mxu0 0
    %1608 = vmatprep.subr.bf16.mxu0 0
    %1609 = vmatpush1.bf16.msra.mxu0 0
    %1610 = vmatprep.subr.bf16.mxu0 0
    %1611 = vmatpush1.bf16.msra.mxu0 0
    %1612 = vmatprep.subr.bf16.mxu0 0
    %1613 = vmatpush1.bf16.msra.mxu0 0
    %1614 = vmatprep.mubr.bf16.mxu0 0
    %1615 = vmatmul.mubr.bf16.gmra.mrb[0].mxu0 %v1580
    %v1616 = vpop.f32.mrb[0].mxu0
    %v1617 = vadd.f32 %v1577, %v1616
    %v1618 = vpop.f32.mrb[0].mxu0
    %v1619 = vpop.f32.mrb[0].mxu0
    %v1620 = vadd.f32 %v1577, %v1619
    %v1621 = vpop.f32.mrb[0].mxu0
    %1622 = vdwg.mxu0
    %v1623 = vmax.f32 %v1617, 0.0
    %v1624 = vmax.f32 %v1620, 0.0
    %s1625 = scalar_lea.vmem %s13, 256
    %v1626 = vld [vmem:[%s1625] sm:$0xff]
    %v1627 = vld [vmem:[%s1625 + $0x8] sm:$0xff]
    %v1628 = vld [vmem:[%s1625 + $0x10] sm:$0xff]
    %v1629 = vld [vmem:[%s1625 + $0x18] sm:$0xff]
    %v1630 = vld [vmem:[%s1625 + $0x20] sm:$0xff]
    %v1631 = vld [vmem:[%s1625 + $0x28] sm:$0xff]
    %v1632 = vld [vmem:[%s1625 + $0x30] sm:$0xff]
    %v1633 = vld [vmem:[%s1625 + $0x38] sm:$0xff]
    %v1634 = vld [vmem:[%s1625 + $0x40] sm:$0xff]
    %v1635 = vld [vmem:[%s1625 + $0x48] sm:$0xff]
    %v1636 = vld [vmem:[%s1625 + $0x50] sm:$0xff]
    %v1637 = vld [vmem:[%s1625 + $0x58] sm:$0xff]
    %v1638 = vld [vmem:[%s1625 + $0x60] sm:$0xff]
    %v1639 = vld [vmem:[%s1625 + $0x68] sm:$0xff]
    %v1640 = vld [vmem:[%s1625 + $0x70] sm:$0xff]
    %v1641 = vld [vmem:[%s1625 + $0x78] sm:$0xff]
    %v1642 = vpack.c.bf16 %v1624, %v1623
    %v1643 = vpack.c.bf16 %v1627, %v1626
    %v1644 = vpack.c.bf16 %v1629, %v1628
    %v1645 = vpack.c.bf16 %v1631, %v1630
    %v1646 = vpack.c.bf16 %v1633, %v1632
    %v1647 = vpack.c.bf16 %v1635, %v1634
    %v1648 = vpack.c.bf16 %v1637, %v1636
    %v1649 = vpack.c.bf16 %v1639, %v1638
    %v1650 = vpack.c.bf16 %v1641, %v1640
    %s1651 = scalar_lea.vmem %s14, 2
    %v1652 = vld [vmem:[%s1651] sm:$0x1]
    %v1654 = vlaneseq
    %v1655 = vshrl.u32 %v1654, 7
    %v1656 = vsub.s32 0, %v1655
    %v1657 = vrot.slane %v1652, %v1656
    %1659 = vmatprep.subr.bf16.mxu0 0
    %1660 = vmatpush1.bf16.msra.mxu0 %v1643
    %1661 = vmatprep.subr.bf16.mxu0 0
    %1662 = vmatpush1.bf16.msra.mxu0 %v1644
    %1663 = vmatprep.subr.bf16.mxu0 0
    %1664 = vmatpush1.bf16.msra.mxu0 %v1645
    %1665 = vmatprep.subr.bf16.mxu0 0
    %1666 = vmatpush1.bf16.msra.mxu0 %v1646
    %1667 = vmatprep.subr.bf16.mxu0 0
    %1668 = vmatpush1.bf16.msra.mxu0 %v1647
    %1669 = vmatprep.subr.bf16.mxu0 0
    %1670 = vmatpush1.bf16.msra.mxu0 %v1648
    %1671 = vmatprep.subr.bf16.mxu0 0
    %1672 = vmatpush1.bf16.msra.mxu0 %v1649
    %1673 = vmatprep.subr.bf16.mxu0 0
    %1674 = vmatpush1.bf16.msra.mxu0 %v1650
    %1675 = vmatprep.subr.bf16.mxu0 0
    %1676 = vmatpush1.bf16.msra.mxu0 0
    %1677 = vmatprep.subr.bf16.mxu0 0
    %1678 = vmatpush1.bf16.msra.mxu0 0
    %1679 = vmatprep.subr.bf16.mxu0 0
    %1680 = vmatpush1.bf16.msra.mxu0 0
    %1681 = vmatprep.subr.bf16.mxu0 0
    %1682 = vmatpush1.bf16.msra.mxu0 0
    %1683 = vmatprep.subr.bf16.mxu0 0
    %1684 = vmatpush1.bf16.msra.mxu0 0
    %1685 = vmatprep.subr.bf16.mxu0 0
    %1686 = vmatpush1.bf16.msra.mxu0 0
    %1687 = vmatprep.subr.bf16.mxu0 0
    %1688 = vmatpush1.bf16.msra.mxu0 0
    %1689 = vmatprep.subr.bf16.mxu0 0
    %1690 = vmatpush1.bf16.msra.mxu0 0
    %1691 = vmatprep.mubr.bf16.mxu0 0
    %1692 = vmatmul.mubr.bf16.gmra.mrb[0].mxu0 %v1642
    %v1693 = vpop.f32.mrb[0].mxu0
    %v1694 = vadd.f32 %v1657, %v1693
    %v1695 = vpop.f32.mrb[0].mxu0
    %v1696 = vpop.f32.mrb[0].mxu0
    %v1697 = vadd.f32 %v1657, %v1696
    %v1698 = vpop.f32.mrb[0].mxu0
    %1699 = vdwg.mxu0
    %v1700 = vadd.f32 %v1555, %v1694
    %v1701 = vadd.f32 %v1556, %v1697
    %s1702 = scalar_lea.vmem %s9, 2
    %v1703 = vld [vmem:[%s1702] sm:$0x1]
    %s1704 = scalar_lea.vmem %s10, 2
    %v1705 = vld [vmem:[%s1704] sm:$0x1]
    %v1706 = vsel %vm183, %v1700, 0.0
    %1707 = vadd.xlane.f32.xlu0 %v1706
    %v1708 = vpop.xlane.xlu0 %1707
    %v1709 = vsel %vm183, %v1701, 0.0
    %1710 = vadd.xlane.f32.xlu0 %v1709
    %v1711 = vpop.xlane.xlu0 %1710
    %v1712 = vmul.f32 %v1708, %v458
    %v1713 = vmul.f32 %v1711, %v458
    %v1714 = vsub.f32 %v1700, %v1712
    %v1715 = vsub.f32 %v1701, %v1713
    %v1716 = vmul.f32 %v1714, %v1714
    %v1717 = vmul.f32 %v1715, %v1715
    %v1718 = vsel %vm183, %v1716, 0.0
    %1719 = vadd.xlane.f32.xlu0 %v1718
    %v1720 = vpop.xlane.xlu0 %1719
    %v1721 = vsel %vm183, %v1717, 0.0
    %1722 = vadd.xlane.f32.xlu0 %v1721
    %v1723 = vpop.xlane.xlu0 %1722
    %v1724 = vmul.f32 %v1720, %v458
    %v1725 = vmul.f32 %v1723, %v458
    %v1726 = vadd.f32 %v1724, 1e-05
    %v1727 = vadd.f32 %v1725, 1e-05
    %v1728 = vrsqrt.pop %v1726
    %v1729 = vrsqrt.pop %v1727
    %v1730 = vmul.f32 %v1714, %v1728
    %v1731 = vmul.f32 %v1715, %v1729
    %v1733 = vlaneseq
    %v1734 = vshrl.u32 %v1733, 7
    %v1735 = vsub.s32 0, %v1734
    %v1736 = vrot.slane %v1703, %v1735
    %v1738 = vmul.f32 %v1730, %v1736
    %v1739 = vmul.f32 %v1731, %v1736
    %v1741 = vlaneseq
    %v1742 = vshrl.u32 %v1741, 7
    %v1743 = vsub.s32 0, %v1742
    %v1744 = vrot.slane %v1705, %v1743
    %v1746 = vadd.f32 %v1738, %v1744
    %v1747 = vadd.f32 %v1739, %v1744
    %v1748 = vsel %vm183, %v1746, 0.0
    %v1749 = vrot.slane %v1748, 4
    %v1750 = vadd.f32 %v1748, %v1749
    %v1751 = vrot.slane %v1750, 2
    %v1752 = vadd.f32 %v1750, %v1751
    %v1753 = vrot.slane %v1752, 1
    %v1754 = vadd.f32 %v1752, %v1753
    %v1755 = vrcp.pop 8.0
    %v1756 = vmul.f32 %v1754, %v1755
    %v1757 = vsel %vm183, %v1747, 0.0
    %v1758 = vrot.slane %v1757, 4
    %v1759 = vadd.f32 %v1757, %v1758
    %v1760 = vrot.slane %v1759, 2
    %v1761 = vadd.f32 %v1759, %v1760
    %v1762 = vrot.slane %v1761, 1
    %v1763 = vadd.f32 %v1761, %v1762
    %v1764 = vmul.f32 %v1763, %v1755
    %vm1765 = vcmask 1040384
    %v1766 = vsel %vm1765, %v1756, %v1764
    %v1767 = vld [vmem:[%s17] sm:$0xff]
    %v1768 = vld [vmem:[%s17 + $0x8] sm:$0xff]
    %v1769 = vld [vmem:[%s17 + $0x10] sm:$0xff]
    %v1770 = vld [vmem:[%s17 + $0x18] sm:$0xff]
    %v1771 = vld [vmem:[%s17 + $0x20] sm:$0xff]
    %v1772 = vld [vmem:[%s17 + $0x28] sm:$0xff]
    %v1773 = vld [vmem:[%s17 + $0x30] sm:$0xff]
    %v1774 = vld [vmem:[%s17 + $0x38] sm:$0xff]
    %v1775 = vpack.c.bf16 %v1766, %v1766
    %v1776 = vpack.c.bf16 %v1768, %v1767
    %v1777 = vpack.c.bf16 %v1770, %v1769
    %v1778 = vpack.c.bf16 %v1772, %v1771
    %v1779 = vpack.c.bf16 %v1774, %v1773
    %v1780 = vld [vmem:[%s18] sm:$0x1]
    %v1782 = vlaneseq
    %v1783 = vshrl.u32 %v1782, 7
    %v1784 = vsub.s32 0, %v1783
    %v1785 = vrot.slane %v1780, %v1784
    %v1788 = vsel %vm183, %v1775, 0
    %1790 = vmatprep.subr.bf16.mxu0 0
    %1791 = vmatpush1.bf16.msra.mxu0 %v1776
    %1792 = vmatprep.subr.bf16.mxu0 0
    %1793 = vmatpush1.bf16.msra.mxu0 %v1777
    %1794 = vmatprep.subr.bf16.mxu0 0
    %1795 = vmatpush1.bf16.msra.mxu0 %v1778
    %1796 = vmatprep.subr.bf16.mxu0 0
    %1797 = vmatpush1.bf16.msra.mxu0 %v1779
    %1798 = vmatprep.subr.bf16.mxu0 0
    %1799 = vmatpush1.bf16.msra.mxu0 0
    %1800 = vmatprep.subr.bf16.mxu0 0
    %1801 = vmatpush1.bf16.msra.mxu0 0
    %1802 = vmatprep.subr.bf16.mxu0 0
    %1803 = vmatpush1.bf16.msra.mxu0 0
    %1804 = vmatprep.subr.bf16.mxu0 0
    %1805 = vmatpush1.bf16.msra.mxu0 0
    %1806 = vmatprep.subr.bf16.mxu0 0
    %1807 = vmatpush1.bf16.msra.mxu0 0
    %1808 = vmatprep.subr.bf16.mxu0 0
    %1809 = vmatpush1.bf16.msra.mxu0 0
    %1810 = vmatprep.subr.bf16.mxu0 0
    %1811 = vmatpush1.bf16.msra.mxu0 0
    %1812 = vmatprep.subr.bf16.mxu0 0
    %1813 = vmatpush1.bf16.msra.mxu0 0
    %1814 = vmatprep.subr.bf16.mxu0 0
    %1815 = vmatpush1.bf16.msra.mxu0 0
    %1816 = vmatprep.subr.bf16.mxu0 0
    %1817 = vmatpush1.bf16.msra.mxu0 0
    %1818 = vmatprep.subr.bf16.mxu0 0
    %1819 = vmatpush1.bf16.msra.mxu0 0
    %1820 = vmatprep.subr.bf16.mxu0 0
    %1821 = vmatpush1.bf16.msra.mxu0 0
    %1822 = vmatprep.mubr.bf16.mxu0 0
    %1823 = vmatmul.mubr.bf16.gmra.mrb[0].mxu0 %v1788
    %v1824 = vpop.f32.mrb[0].mxu0
    %v1825 = vadd.f32 %v1785, %v1824
    %v1826 = vpop.f32.mrb[0].mxu0
    %v1827 = vpop.f32.mrb[0].mxu0
    %v1828 = vpop.f32.mrb[0].mxu0
    %1829 = vdwg.mxu0
    %v1830 = vmax.f32 %v1825, 0.0
    %v1831 = vld [vmem:[%s19] sm:$0xff]
    %v1832 = vld [vmem:[%s19 + $0x8] sm:$0xff]
    %v1833 = vld [vmem:[%s19 + $0x10] sm:$0xff]
    %v1834 = vld [vmem:[%s19 + $0x18] sm:$0xff]
    %v1835 = vld [vmem:[%s19 + $0x20] sm:$0xff]
    %v1836 = vld [vmem:[%s19 + $0x28] sm:$0xff]
    %v1837 = vld [vmem:[%s19 + $0x30] sm:$0xff]
    %v1838 = vld [vmem:[%s19 + $0x38] sm:$0xff]
    %v1839 = vpack.c.bf16 %v1830, %v1830
    %v1840 = vpack.c.bf16 %v1832, %v1831
    %v1841 = vpack.c.bf16 %v1834, %v1833
    %v1842 = vpack.c.bf16 %v1836, %v1835
    %v1843 = vpack.c.bf16 %v1838, %v1837
    %v1844 = vld [vmem:[%s20] sm:$0x1]
    %v1846 = vlaneseq
    %v1847 = vshrl.u32 %v1846, 7
    %v1848 = vsub.s32 0, %v1847
    %v1849 = vrot.slane %v1844, %v1848
    %v1852 = vsel %vm183, %v1839, 0
    %1854 = vmatprep.subr.bf16.mxu0 0
    %1855 = vmatpush1.bf16.msra.mxu0 %v1840
    %1856 = vmatprep.subr.bf16.mxu0 0
    %1857 = vmatpush1.bf16.msra.mxu0 %v1841
    %1858 = vmatprep.subr.bf16.mxu0 0
    %1859 = vmatpush1.bf16.msra.mxu0 %v1842
    %1860 = vmatprep.subr.bf16.mxu0 0
    %1861 = vmatpush1.bf16.msra.mxu0 %v1843
    %1862 = vmatprep.subr.bf16.mxu0 0
    %1863 = vmatpush1.bf16.msra.mxu0 0
    %1864 = vmatprep.subr.bf16.mxu0 0
    %1865 = vmatpush1.bf16.msra.mxu0 0
    %1866 = vmatprep.subr.bf16.mxu0 0
    %1867 = vmatpush1.bf16.msra.mxu0 0
    %1868 = vmatprep.subr.bf16.mxu0 0
    %1869 = vmatpush1.bf16.msra.mxu0 0
    %1870 = vmatprep.subr.bf16.mxu0 0
    %1871 = vmatpush1.bf16.msra.mxu0 0
    %1872 = vmatprep.subr.bf16.mxu0 0
    %1873 = vmatpush1.bf16.msra.mxu0 0
    %1874 = vmatprep.subr.bf16.mxu0 0
    %1875 = vmatpush1.bf16.msra.mxu0 0
    %1876 = vmatprep.subr.bf16.mxu0 0
    %1877 = vmatpush1.bf16.msra.mxu0 0
    %1878 = vmatprep.subr.bf16.mxu0 0
    %1879 = vmatpush1.bf16.msra.mxu0 0
    %1880 = vmatprep.subr.bf16.mxu0 0
    %1881 = vmatpush1.bf16.msra.mxu0 0
    %1882 = vmatprep.subr.bf16.mxu0 0
    %1883 = vmatpush1.bf16.msra.mxu0 0
    %1884 = vmatprep.subr.bf16.mxu0 0
    %1885 = vmatpush1.bf16.msra.mxu0 0
    %1886 = vmatprep.mubr.bf16.mxu0 0
    %1887 = vmatmul.mubr.bf16.gmra.mrb[0].mxu0 %v1852
    %v1888 = vpop.f32.mrb[0].mxu0
    %v1889 = vadd.f32 %v1849, %v1888
    %v1890 = vpop.f32.mrb[0].mxu0
    %v1891 = vpop.f32.mrb[0].mxu0
    %v1892 = vpop.f32.mrb[0].mxu0
    %1893 = vdwg.mxu0
    %vm1894 = vcmask 9216
    %1895 = vst.msk [vmem:[#allocation5] sm:$0x3] %vm1894, %v1889
    // Predicated region
    $region90: #{tpu_custom_call.1} parent=1 // pred_check
      _
    $region91: #{tpu_custom_call.1} parent=1 // pred_check_branch
      %1897 = sbr.rel (0) target = $region93
    $region92: #{tpu_custom_call.1} parent=1 // pred_region
      %s1899 = ssub.s32 32, 32
      %1900 = vsyncadd [#allocation4], %s1899
      %s1902 = sshll.u32 [#allocation5], 4
      %s1903 = int_to_ptr.vmem [resolvable:$true] %s1902
      %1905 = dma.vmem_to_hbm [thread:$0]  %s1903, 32, %s21, [#allocation4]
    $region93: #{tpu_custom_call.1} parent=1 // pred_fallthru
      _
    // Predicated region
    $region94: #{tpu_custom_call.1} parent=1 // pred_check
      _
    $region95: #{tpu_custom_call.1} parent=1 // pred_check_branch
      %1907 = sbr.rel (0) target = $region97
    $region96: #{tpu_custom_call.1} parent=1 // pred_region
      %1908 = dma.done [#allocation4], 32
    $region97: #{tpu_custom_call.1} parent=1 // pred_fallthru
      _
    %1909 = vsyncpa [#allocation3], 1
    %1910 = vsyncpa [#allocation4], 1

</llo_original>
